<compile_context>
chip_gen: v7x
topology: tpu7x:2x2x1
jax: 0.10.0
libtpu: 0.0.40
codegen_flags: <defaults>
</compile_context>

<pallas_src>
import math
import functools

import jax
import jax.numpy as jnp
from jax.experimental import pallas as pl
from jax.experimental.pallas import tpu as pltpu

# ---------------- model hyper-params (small, per the module __init__) -------
B = 2          # batch
S = 8          # sequence length
H = 32         # hidden
NUM_HEADS = 4  # attn_heads
FF = 64        # feed_forward_hidden
EPS = 1e-6


def _layernorm(x, a, b, eps):
    # Matches the PyTorch LayerNorm in the module:
    #   mean over last dim, *unbiased* std (ddof=1), eps added to std.
    mean = jnp.mean(x, axis=-1, keepdims=True)
    var = jnp.sum((x - mean) ** 2, axis=-1, keepdims=True) / (x.shape[-1] - 1)
    std = jnp.sqrt(var)
    return a * (x - mean) / (std + eps) + b


def transformer_layer_kernel(x_ref, amask_ref, slab_ref, out_ref,
                             *, num_heads, ff, eps):
    Bq, Sq, Hq = x_ref.shape
    dk = Hq // num_heads
    BS = Bq * Sq
    h3 = 3 * Hq

    # ---- unpack the single weight/bias slab (static value slices) ----------
    wall = slab_ref[...]                       # [2H+FF+8, width]
    wqkv = wall[0:Hq, 0:h3]                    # [H, 3H]  (Wq pre-scaled by 1/sqrt(dk))
    wo   = wall[Hq:2 * Hq, 0:Hq]               # [H, H]
    w1   = wall[Hq:2 * Hq, Hq:Hq + ff]         # [H, FF]
    w2   = wall[2 * Hq:2 * Hq + ff, 0:Hq]      # [FF, H]
    brow = 2 * Hq + ff
    bqkv = wall[brow + 0:brow + 1, 0:h3]       # [1, 3H]
    b1   = wall[brow + 1:brow + 2, 0:ff]
    bo   = wall[brow + 2:brow + 3, 0:Hq]
    b2   = wall[brow + 3:brow + 4, 0:Hq]
    ln0_a = wall[brow + 4:brow + 5, 0:Hq]
    ln0_b = wall[brow + 5:brow + 6, 0:Hq]
    ln1_a = wall[brow + 6:brow + 7, 0:Hq]
    ln1_b = wall[brow + 7:brow + 8, 0:Hq]

    x2 = x_ref[...].reshape(BS, Hq)            # [B*S, H]

    # ---------------- sublayer 0: x + SelfAttn(LN(x)) ----------------------
    y2 = _layernorm(x2, ln0_a, ln0_b, eps)

    # One MXU push for the whole fused Q/K/V projection.
    qkv = jnp.dot(y2, wqkv, preferred_element_type=jnp.float32) + bqkv  # [BS, 3H]
    qkv3 = qkv.reshape(Bq, Sq, h3)                                      # [B, S, 3H]

    # Split heads out of the lane dim (tiny 8-lane slices, stacked head-major:
    # bh = h*B + b). The additive mask is prepared with the same ordering.
    q = jnp.concatenate(
        [qkv3[:, :, 0 * Hq + h * dk:0 * Hq + (h + 1) * dk] for h in range(num_heads)],
        axis=0)                                                         # [nh*B, S, dk]
    k = jnp.concatenate(
        [qkv3[:, :, 1 * Hq + h * dk:1 * Hq + (h + 1) * dk] for h in range(num_heads)],
        axis=0)
    v = jnp.concatenate(
        [qkv3[:, :, 2 * Hq + h * dk:2 * Hq + (h + 1) * dk] for h in range(num_heads)],
        axis=0)

    # Scaled dot-product attention for all (head, batch) pairs at once.
    scores = jnp.einsum("bqd,bkd->bqk", q, k,
                        preferred_element_type=jnp.float32)             # [nh*B,S,S]
    scores = scores + amask_ref[...]                                    # additive mask
    scores = scores - jnp.max(scores, axis=-1, keepdims=True)
    p = jnp.exp(scores)
    denom = jnp.sum(p, axis=-1, keepdims=True)
    inv = pl.reciprocal(denom, approx=True)      # EUP slot
    inv = inv * (2.0 - denom * inv)              # one Newton step -> ~f32 exact
    p = p * inv
    ctx = jnp.einsum("bqk,bkd->bqd", p, v,
                     preferred_element_type=jnp.float32)                # [nh*B,S,dk]

    # Re-assemble concat-heads [B*S, H] and do ONE output-projection matmul.
    ctx_cat = jnp.concatenate(
        [ctx[h * Bq:(h + 1) * Bq] for h in range(num_heads)], axis=-1)  # [B,S,H]
    ctx2 = ctx_cat.reshape(BS, Hq)
    attn = jnp.dot(ctx2, wo, preferred_element_type=jnp.float32) + bo
    x1 = x2 + attn

    # ---------------- sublayer 1: x1 + FFN(LN(x1)) --------------------------
    y1 = _layernorm(x1, ln1_a, ln1_b, eps)
    hdn = jnp.maximum(
        jnp.dot(y1, w1, preferred_element_type=jnp.float32) + b1, 0.0)
    ffo = jnp.dot(hdn, w2, preferred_element_type=jnp.float32) + b2

    out_ref[...] = (x1 + ffo).reshape(Bq, Sq, Hq)
    # TODO(synk): all nn.Dropout layers are treated as identity (eval mode).


def _pack_params(p, num_heads):
    """Pack every weight / bias / LN param into one lane-aligned f32 slab."""
    Hq = p["wq"].shape[0]
    dk = Hq // num_heads
    ff = p["w1"].shape[1]
    scale = 1.0 / math.sqrt(dk)
    width = max(3 * Hq, Hq + ff)

    def padw(m):
        return jnp.pad(m, ((0, 0), (0, width - m.shape[1])))

    def row(v):
        return jnp.pad(v, (0, width - v.shape[0]))[None, :]

    wqkv = jnp.concatenate([p["wq"] * scale, p["wk"], p["wv"]], axis=1)   # [H, 3H]
    bqkv = jnp.concatenate([p["bq"] * scale, p["bk"], p["bv"]])           # [3H]
    blk_ow1 = jnp.concatenate([p["wo"], p["w1"]], axis=1)                 # [H, H+FF]
    bias_rows = jnp.concatenate(
        [row(bqkv), row(p["b1"]), row(p["bo"]), row(p["b2"]),
         row(p["ln0_a"]), row(p["ln0_b"]), row(p["ln1_a"]), row(p["ln1_b"])],
        axis=0)                                                           # [8, width]
    slab = jnp.concatenate(
        [padw(wqkv), padw(blk_ow1), padw(p["w2"]), bias_rows],
        axis=0).astype(jnp.float32)                                       # [2H+FF+8, width]
    return slab


def transformer_layer(x, mask, params, *, num_heads=NUM_HEADS, eps=EPS):
    """x: [B,S,H] f32, mask: [B,S,S] (0 == masked), params: dict of weights."""
    Bq, Sq, Hq = x.shape
    dk = Hq // num_heads
    ff = params["w1"].shape[1]

    slab = _pack_params(params, num_heads)

    # Additive f32 mask, head-major ordering (bh = h*B + b) to match the kernel.
    amask = jnp.where(mask == 0, jnp.float32(-1e9), jnp.float32(0.0))     # [B,S,S]
    amask = jnp.broadcast_to(
        amask[None], (num_heads, Bq, Sq, Sq)).reshape(num_heads * Bq, Sq, Sq)

    inputs = (x.astype(jnp.float32), amask, slab)

    def full_spec(a):
        nd = a.ndim
        return pl.BlockSpec(a.shape, lambda i, _nd=nd: (0,) * _nd)

    kernel = functools.partial(transformer_layer_kernel,
                               num_heads=num_heads, ff=ff, eps=eps)

    # Advisory cost: kernel is tiny / overhead-dominated.
    flops = int(2 * Bq * Sq * Hq * 3 * Hq                  # QKV projection
                + 2 * (num_heads * Bq) * Sq * Sq * dk * 2  # scores + ctx
                + 2 * Bq * Sq * Hq * Hq                    # output projection
                + 2 * Bq * Sq * Hq * ff * 2)               # FFN
    transcendentals = int((num_heads * Bq) * Sq * Sq + (num_heads * Bq) * Sq)
    bytes_accessed = int(4 * (x.size + amask.size + slab.size + x.size))
    cost = pl.CostEstimate(flops=flops, transcendentals=transcendentals,
                           bytes_accessed=bytes_accessed)

    # Single grid step: whole layer (~4 KiB activations + ~52 KiB weights) sits
    # in VMEM, so extra grid steps are pure prologue/epilogue overhead.
    # TODO(synk): on v7x (2 TensorCores/chip) a grid=(B,) "parallel" batch split
    # would map the two batch elements onto the two cores.
    return pl.pallas_call(
        kernel,
        out_shape=jax.ShapeDtypeStruct((Bq, Sq, Hq), jnp.float32),
        grid=(1,),
        in_specs=[full_spec(a) for a in inputs],
        out_specs=pl.BlockSpec((Bq, Sq, Hq), lambda i: (0, 0, 0)),
        compiler_params=pltpu.CompilerParams(
            dimension_semantics=("arbitrary",)),
        cost_estimate=cost,
    )(*inputs)


# ----------------------- pure-JAX reference (for checking) ------------------
def transformer_layer_ref(x, mask, p):
    def ln(v, a, b):
        mean = jnp.mean(v, axis=-1, keepdims=True)
        var = jnp.sum((v - mean) ** 2, axis=-1, keepdims=True) / (v.shape[-1] - 1)
        return a * (v - mean) / (jnp.sqrt(var) + EPS) + b

    Bq, Sq, Hq = x.shape
    dk = Hq // NUM_HEADS
    y = ln(x, p["ln0_a"], p["ln0_b"])
    q = y @ p["wq"] + p["bq"]
    k = y @ p["wk"] + p["bk"]
    v = y @ p["wv"] + p["bv"]
    q = q.reshape(Bq, Sq, NUM_HEADS, dk).transpose(0, 2, 1, 3)
    k = k.reshape(Bq, Sq, NUM_HEADS, dk).transpose(0, 2, 1, 3)
    v = v.reshape(Bq, Sq, NUM_HEADS, dk).transpose(0, 2, 1, 3)
    scores = jnp.einsum("bhqd,bhkd->bhqk", q, k) / math.sqrt(dk)
    scores = jnp.where(mask[:, None, :, :] == 0, -1e9, scores)
    pa = jax.nn.softmax(scores, axis=-1)
    ctx = jnp.einsum("bhqk,bhkd->bhqd", pa, v)
    ctx = ctx.transpose(0, 2, 1, 3).reshape(Bq, Sq, Hq)
    x1 = x + ctx @ p["wo"] + p["bo"]
    y1 = ln(x1, p["ln1_a"], p["ln1_b"])
    ffo = jnp.maximum(y1 @ p["w1"] + p["b1"], 0.0) @ p["w2"] + p["b2"]
    return x1 + ffo


def make_params(key):
    ks = jax.random.split(key, 16)

    def lin_w(k, fan_in, fan_out, gain):
        # xavier-normal-ish deterministic init; weight stored as [in, out]
        std = gain * math.sqrt(2.0 / (fan_in + fan_out))
        return jax.random.normal(k, (fan_in, fan_out), jnp.float32) * std

    def lin_b(k, fan_out):
        return 0.1 * jax.random.normal(k, (fan_out,), jnp.float32)

    return {
        "wq": lin_w(ks[0], H, H, 1.414), "bq": lin_b(ks[1], H),
        "wk": lin_w(ks[2], H, H, 1.414), "bk": lin_b(ks[3], H),
        "wv": lin_w(ks[4], H, H, 1.414), "bv": lin_b(ks[5], H),
        "wo": lin_w(ks[6], H, H, 1.414), "bo": lin_b(ks[7], H),
        "w1": lin_w(ks[8], H, FF, 1.0),  "b1": lin_b(ks[9], FF),
        "w2": lin_w(ks[10], FF, H, 1.0), "b2": lin_b(ks[11], H),
        "ln0_a": 1.0 + 0.05 * jax.random.normal(ks[12], (H,), jnp.float32),
        "ln0_b": 0.05 * jax.random.normal(ks[13], (H,), jnp.float32),
        "ln1_a": 1.0 + 0.05 * jax.random.normal(ks[14], (H,), jnp.float32),
        "ln1_b": 0.05 * jax.random.normal(ks[15], (H,), jnp.float32),
    }


if __name__ == "__main__":
    key = jax.random.PRNGKey(0)
    kx, km, kp = jax.random.split(key, 3)

    x = jax.random.normal(kx, (B, S, H), jnp.float32)
    mask = (jax.random.uniform(km, (B, S, S)) > 0.2).astype(jnp.int32)
    # keep the diagonal visible so no row is fully masked
    mask = mask.at[:, jnp.arange(S), jnp.arange(S)].set(1)

    params = make_params(kp)

    out = transformer_layer(x, mask, params)
    out = jax.block_until_ready(out)

    ref = transformer_layer_ref(x, mask, params)
    assert out.shape == (B, S, H)
    assert jnp.allclose(out, ref, rtol=1e-4, atol=1e-4), "mismatch vs reference"

    print("KERNEL_OK")
</pallas_src>

<mosaic_0001>
module attributes {stable_mosaic.version = 11 : i64} {
  func.func @transformer_layer_kernel(%arg0: i32, %arg1: memref<2x8x32xf32, #tpu.memory_space<vmem>>, %arg2: memref<8x8x8xf32, #tpu.memory_space<vmem>>, %arg3: memref<136x96xf32, #tpu.memory_space<vmem>>, %arg4: memref<2x8x32xf32, #tpu.memory_space<vmem>>) attributes {dimension_semantics = [#tpu.dimension_semantics<arbitrary>], iteration_bounds = array<i64: 1>, scalar_prefetch = 0 : i64, scratch_operands = 0 : i64, tpu.core_type = #tpu.core_type<tc>, window_params = [{pipeline_mode = #tpu.pipeline_mode<synchronous>, transform_indices = @transform_0, window_bounds = array<i64: 2, 8, 32>}, {pipeline_mode = #tpu.pipeline_mode<synchronous>, transform_indices = @transform_1, window_bounds = array<i64: 8, 8, 8>}, {pipeline_mode = #tpu.pipeline_mode<synchronous>, transform_indices = @transform_2, window_bounds = array<i64: 136, 96>}, {pipeline_mode = #tpu.pipeline_mode<synchronous>, transform_indices = @transform_3, window_bounds = array<i64: 2, 8, 32>}]} {
    %c0 = arith.constant 0 : index
    %c0_0 = arith.constant 0 : index
    %0 = vector.load %arg3[%c0, %c0_0] : memref<136x96xf32, #tpu.memory_space<vmem>>, vector<136x96xf32>
    %1 = vector.extract_strided_slice %0 {offsets = [0, 0], sizes = [32, 96], strides = [1, 1]} : vector<136x96xf32> to vector<32x96xf32>
    %2 = vector.extract_strided_slice %0 {offsets = [32, 0], sizes = [32, 32], strides = [1, 1]} : vector<136x96xf32> to vector<32x32xf32>
    %3 = vector.extract_strided_slice %0 {offsets = [32, 32], sizes = [32, 64], strides = [1, 1]} : vector<136x96xf32> to vector<32x64xf32>
    %4 = vector.extract_strided_slice %0 {offsets = [64, 0], sizes = [64, 32], strides = [1, 1]} : vector<136x96xf32> to vector<64x32xf32>
    %5 = vector.extract_strided_slice %0 {offsets = [128, 0], sizes = [1, 96], strides = [1, 1]} : vector<136x96xf32> to vector<1x96xf32>
    %6 = vector.extract_strided_slice %0 {offsets = [129, 0], sizes = [1, 64], strides = [1, 1]} : vector<136x96xf32> to vector<1x64xf32>
    %7 = vector.extract_strided_slice %0 {offsets = [130, 0], sizes = [1, 32], strides = [1, 1]} : vector<136x96xf32> to vector<1x32xf32>
    %8 = vector.extract_strided_slice %0 {offsets = [131, 0], sizes = [1, 32], strides = [1, 1]} : vector<136x96xf32> to vector<1x32xf32>
    %9 = vector.extract_strided_slice %0 {offsets = [132, 0], sizes = [1, 32], strides = [1, 1]} : vector<136x96xf32> to vector<1x32xf32>
    %10 = vector.extract_strided_slice %0 {offsets = [133, 0], sizes = [1, 32], strides = [1, 1]} : vector<136x96xf32> to vector<1x32xf32>
    %11 = vector.extract_strided_slice %0 {offsets = [134, 0], sizes = [1, 32], strides = [1, 1]} : vector<136x96xf32> to vector<1x32xf32>
    %12 = vector.extract_strided_slice %0 {offsets = [135, 0], sizes = [1, 32], strides = [1, 1]} : vector<136x96xf32> to vector<1x32xf32>
    %c0_1 = arith.constant 0 : index
    %c0_2 = arith.constant 0 : index
    %c0_3 = arith.constant 0 : index
    %13 = vector.load %arg1[%c0_1, %c0_2, %c0_3] : memref<2x8x32xf32, #tpu.memory_space<vmem>>, vector<2x8x32xf32>
    %14 = vector.shape_cast %13 : vector<2x8x32xf32> to vector<16x32xf32>
    %cst = arith.constant dense<0.000000e+00> : vector<16xf32>
    %15 = vector.multi_reduction <add>, %14, %cst [1] : vector<16x32xf32> to vector<16xf32>
    %16 = vector.shape_cast %15 : vector<16xf32> to vector<16x1xf32>
    %cst_4 = arith.constant 3.200000e+01 : f32
    %17 = vector.broadcast %cst_4 : f32 to vector<16x1xf32>
    %18 = arith.divf %16, %17 : vector<16x1xf32>
    %19 = vector.broadcast %18 : vector<16x1xf32> to vector<16x32xf32>
    %20 = arith.subf %14, %19 : vector<16x32xf32>
    %21 = arith.mulf %20, %20 : vector<16x32xf32>
    %cst_5 = arith.constant dense<0.000000e+00> : vector<16xf32>
    %22 = vector.multi_reduction <add>, %21, %cst_5 [1] : vector<16x32xf32> to vector<16xf32>
    %23 = vector.shape_cast %22 : vector<16xf32> to vector<16x1xf32>
    %cst_6 = arith.constant 3.100000e+01 : f32
    %24 = vector.broadcast %cst_6 : f32 to vector<16x1xf32>
    %25 = arith.divf %23, %24 : vector<16x1xf32>
    %26 = math.sqrt %25 : vector<16x1xf32>
    %27 = vector.broadcast %18 : vector<16x1xf32> to vector<16x32xf32>
    %28 = arith.subf %14, %27 : vector<16x32xf32>
    %29 = vector.broadcast %9 : vector<1x32xf32> to vector<16x32xf32>
    %30 = arith.mulf %29, %28 : vector<16x32xf32>
    %cst_7 = arith.constant 9.99999997E-7 : f32
    %31 = vector.broadcast %cst_7 : f32 to vector<16x1xf32>
    %32 = arith.addf %26, %31 : vector<16x1xf32>
    %33 = vector.broadcast %32 : vector<16x1xf32> to vector<16x32xf32>
    %34 = arith.divf %30, %33 : vector<16x32xf32>
    %35 = vector.broadcast %10 : vector<1x32xf32> to vector<16x32xf32>
    %36 = arith.addf %34, %35 : vector<16x32xf32>
    %cst_8 = arith.constant dense<0.000000e+00> : vector<16x96xf32>
    %37 = tpu.matmul %36, %1, %cst_8 {dimension_numbers = #tpu.dot_dimension_numbers<[1], [0], [0], [1], [0, 0, 1, 1], [], []>} : vector<16x32xf32>, vector<32x96xf32>, vector<16x96xf32> -> vector<16x96xf32>
    %38 = vector.broadcast %5 : vector<1x96xf32> to vector<16x96xf32>
    %39 = arith.addf %37, %38 : vector<16x96xf32>
    %40 = vector.shape_cast %39 : vector<16x96xf32> to vector<2x8x96xf32>
    %41 = vector.extract_strided_slice %40 {offsets = [0, 0, 0], sizes = [2, 8, 8], strides = [1, 1, 1]} : vector<2x8x96xf32> to vector<2x8x8xf32>
    %42 = vector.extract_strided_slice %40 {offsets = [0, 0, 8], sizes = [2, 8, 8], strides = [1, 1, 1]} : vector<2x8x96xf32> to vector<2x8x8xf32>
    %43 = vector.extract_strided_slice %40 {offsets = [0, 0, 16], sizes = [2, 8, 8], strides = [1, 1, 1]} : vector<2x8x96xf32> to vector<2x8x8xf32>
    %44 = vector.extract_strided_slice %40 {offsets = [0, 0, 24], sizes = [2, 8, 8], strides = [1, 1, 1]} : vector<2x8x96xf32> to vector<2x8x8xf32>
    %45 = tpu.concatenate %41, %42, %43, %44 in 0 : vector<2x8x8xf32>, vector<2x8x8xf32>, vector<2x8x8xf32>, vector<2x8x8xf32> -> vector<8x8x8xf32>
    %46 = vector.extract_strided_slice %40 {offsets = [0, 0, 32], sizes = [2, 8, 8], strides = [1, 1, 1]} : vector<2x8x96xf32> to vector<2x8x8xf32>
    %47 = vector.extract_strided_slice %40 {offsets = [0, 0, 40], sizes = [2, 8, 8], strides = [1, 1, 1]} : vector<2x8x96xf32> to vector<2x8x8xf32>
    %48 = vector.extract_strided_slice %40 {offsets = [0, 0, 48], sizes = [2, 8, 8], strides = [1, 1, 1]} : vector<2x8x96xf32> to vector<2x8x8xf32>
    %49 = vector.extract_strided_slice %40 {offsets = [0, 0, 56], sizes = [2, 8, 8], strides = [1, 1, 1]} : vector<2x8x96xf32> to vector<2x8x8xf32>
    %50 = tpu.concatenate %46, %47, %48, %49 in 0 : vector<2x8x8xf32>, vector<2x8x8xf32>, vector<2x8x8xf32>, vector<2x8x8xf32> -> vector<8x8x8xf32>
    %51 = vector.extract_strided_slice %40 {offsets = [0, 0, 64], sizes = [2, 8, 8], strides = [1, 1, 1]} : vector<2x8x96xf32> to vector<2x8x8xf32>
    %52 = vector.extract_strided_slice %40 {offsets = [0, 0, 72], sizes = [2, 8, 8], strides = [1, 1, 1]} : vector<2x8x96xf32> to vector<2x8x8xf32>
    %53 = vector.extract_strided_slice %40 {offsets = [0, 0, 80], sizes = [2, 8, 8], strides = [1, 1, 1]} : vector<2x8x96xf32> to vector<2x8x8xf32>
    %54 = vector.extract_strided_slice %40 {offsets = [0, 0, 88], sizes = [2, 8, 8], strides = [1, 1, 1]} : vector<2x8x96xf32> to vector<2x8x8xf32>
    %55 = tpu.concatenate %51, %52, %53, %54 in 0 : vector<2x8x8xf32>, vector<2x8x8xf32>, vector<2x8x8xf32>, vector<2x8x8xf32> -> vector<8x8x8xf32>
    "tpu.trace_start"() <{level = 10 : i32, message = "bqd,bkd->bqk"}> : () -> ()
    %cst_9 = arith.constant dense<0.000000e+00> : vector<8x8x8xf32>
    %56 = tpu.matmul %45, %50, %cst_9 {dimension_numbers = #tpu.dot_dimension_numbers<[2], [2], [1], [1], [0, 0, 0, 1, 1, 1], [0], [0]>} : vector<8x8x8xf32>, vector<8x8x8xf32>, vector<8x8x8xf32> -> vector<8x8x8xf32>
    "tpu.trace_stop"() : () -> ()
    %c0_10 = arith.constant 0 : index
    %c0_11 = arith.constant 0 : index
    %c0_12 = arith.constant 0 : index
    %57 = vector.load %arg2[%c0_10, %c0_11, %c0_12] : memref<8x8x8xf32, #tpu.memory_space<vmem>>, vector<8x8x8xf32>
    %58 = arith.addf %56, %57 : vector<8x8x8xf32>
    %cst_13 = arith.constant dense<0xFF800000> : vector<8x8xf32>
    %59 = vector.multi_reduction <maximumf>, %58, %cst_13 [2] : vector<8x8x8xf32> to vector<8x8xf32>
    %60 = vector.shape_cast %59 : vector<8x8xf32> to vector<8x8x1xf32>
    %61 = vector.broadcast %60 : vector<8x8x1xf32> to vector<8x8x8xf32>
    %62 = arith.subf %58, %61 : vector<8x8x8xf32>
    %63 = math.exp %62 : vector<8x8x8xf32>
    %cst_14 = arith.constant dense<0.000000e+00> : vector<8x8xf32>
    %64 = vector.multi_reduction <add>, %63, %cst_14 [2] : vector<8x8x8xf32> to vector<8x8xf32>
    %65 = vector.shape_cast %64 : vector<8x8xf32> to vector<8x8x1xf32>
    %66 = tpu.reciprocal %65 {approx = true} : vector<8x8x1xf32> -> vector<8x8x1xf32>
    %67 = arith.mulf %65, %66 : vector<8x8x1xf32>
    %cst_15 = arith.constant 2.000000e+00 : f32
    %68 = vector.broadcast %cst_15 : f32 to vector<8x8x1xf32>
    %69 = arith.subf %68, %67 : vector<8x8x1xf32>
    %70 = arith.mulf %66, %69 : vector<8x8x1xf32>
    %71 = vector.broadcast %70 : vector<8x8x1xf32> to vector<8x8x8xf32>
    %72 = arith.mulf %63, %71 : vector<8x8x8xf32>
    "tpu.trace_start"() <{level = 10 : i32, message = "bqk,bkd->bqd"}> : () -> ()
    %cst_16 = arith.constant dense<0.000000e+00> : vector<8x8x8xf32>
    %73 = tpu.matmul %72, %55, %cst_16 {dimension_numbers = #tpu.dot_dimension_numbers<[2], [1], [1], [2], [0, 0, 0, 1, 1, 2], [0], [0]>} : vector<8x8x8xf32>, vector<8x8x8xf32>, vector<8x8x8xf32> -> vector<8x8x8xf32>
    "tpu.trace_stop"() : () -> ()
    %74 = vector.extract_strided_slice %73 {offsets = [0, 0, 0], sizes = [2, 8, 8], strides = [1, 1, 1]} : vector<8x8x8xf32> to vector<2x8x8xf32>
    %75 = vector.extract_strided_slice %73 {offsets = [2, 0, 0], sizes = [2, 8, 8], strides = [1, 1, 1]} : vector<8x8x8xf32> to vector<2x8x8xf32>
    %76 = vector.extract_strided_slice %73 {offsets = [4, 0, 0], sizes = [2, 8, 8], strides = [1, 1, 1]} : vector<8x8x8xf32> to vector<2x8x8xf32>
    %77 = vector.extract_strided_slice %73 {offsets = [6, 0, 0], sizes = [2, 8, 8], strides = [1, 1, 1]} : vector<8x8x8xf32> to vector<2x8x8xf32>
    %78 = tpu.concatenate %74, %75, %76, %77 in 2 : vector<2x8x8xf32>, vector<2x8x8xf32>, vector<2x8x8xf32>, vector<2x8x8xf32> -> vector<2x8x32xf32>
    %79 = vector.shape_cast %78 : vector<2x8x32xf32> to vector<16x32xf32>
    %cst_17 = arith.constant dense<0.000000e+00> : vector<16x32xf32>
    %80 = tpu.matmul %79, %2, %cst_17 {dimension_numbers = #tpu.dot_dimension_numbers<[1], [0], [0], [1], [0, 0, 1, 1], [], []>} : vector<16x32xf32>, vector<32x32xf32>, vector<16x32xf32> -> vector<16x32xf32>
    %81 = vector.broadcast %7 : vector<1x32xf32> to vector<16x32xf32>
    %82 = arith.addf %80, %81 : vector<16x32xf32>
    %83 = arith.addf %14, %82 : vector<16x32xf32>
    %cst_18 = arith.constant dense<0.000000e+00> : vector<16xf32>
    %84 = vector.multi_reduction <add>, %83, %cst_18 [1] : vector<16x32xf32> to vector<16xf32>
    %85 = vector.shape_cast %84 : vector<16xf32> to vector<16x1xf32>
    %cst_19 = arith.constant 3.200000e+01 : f32
    %86 = vector.broadcast %cst_19 : f32 to vector<16x1xf32>
    %87 = arith.divf %85, %86 : vector<16x1xf32>
    %88 = vector.broadcast %87 : vector<16x1xf32> to vector<16x32xf32>
    %89 = arith.subf %83, %88 : vector<16x32xf32>
    %90 = arith.mulf %89, %89 : vector<16x32xf32>
    %cst_20 = arith.constant dense<0.000000e+00> : vector<16xf32>
    %91 = vector.multi_reduction <add>, %90, %cst_20 [1] : vector<16x32xf32> to vector<16xf32>
    %92 = vector.shape_cast %91 : vector<16xf32> to vector<16x1xf32>
    %cst_21 = arith.constant 3.100000e+01 : f32
    %93 = vector.broadcast %cst_21 : f32 to vector<16x1xf32>
    %94 = arith.divf %92, %93 : vector<16x1xf32>
    %95 = math.sqrt %94 : vector<16x1xf32>
    %96 = vector.broadcast %87 : vector<16x1xf32> to vector<16x32xf32>
    %97 = arith.subf %83, %96 : vector<16x32xf32>
    %98 = vector.broadcast %11 : vector<1x32xf32> to vector<16x32xf32>
    %99 = arith.mulf %98, %97 : vector<16x32xf32>
    %cst_22 = arith.constant 9.99999997E-7 : f32
    %100 = vector.broadcast %cst_22 : f32 to vector<16x1xf32>
    %101 = arith.addf %95, %100 : vector<16x1xf32>
    %102 = vector.broadcast %101 : vector<16x1xf32> to vector<16x32xf32>
    %103 = arith.divf %99, %102 : vector<16x32xf32>
    %104 = vector.broadcast %12 : vector<1x32xf32> to vector<16x32xf32>
    %105 = arith.addf %103, %104 : vector<16x32xf32>
    %cst_23 = arith.constant dense<0.000000e+00> : vector<16x64xf32>
    %106 = tpu.matmul %105, %3, %cst_23 {dimension_numbers = #tpu.dot_dimension_numbers<[1], [0], [0], [1], [0, 0, 1, 1], [], []>} : vector<16x32xf32>, vector<32x64xf32>, vector<16x64xf32> -> vector<16x64xf32>
    %107 = vector.broadcast %6 : vector<1x64xf32> to vector<16x64xf32>
    %108 = arith.addf %106, %107 : vector<16x64xf32>
    %cst_24 = arith.constant 0.000000e+00 : f32
    %109 = vector.broadcast %cst_24 : f32 to vector<16x64xf32>
    %110 = arith.maximumf %108, %109 : vector<16x64xf32>
    %cst_25 = arith.constant dense<0.000000e+00> : vector<16x32xf32>
    %111 = tpu.matmul %110, %4, %cst_25 {dimension_numbers = #tpu.dot_dimension_numbers<[1], [0], [0], [1], [0, 0, 1, 1], [], []>} : vector<16x64xf32>, vector<64x32xf32>, vector<16x32xf32> -> vector<16x32xf32>
    %112 = vector.broadcast %8 : vector<1x32xf32> to vector<16x32xf32>
    %113 = arith.addf %111, %112 : vector<16x32xf32>
    %114 = arith.addf %83, %113 : vector<16x32xf32>
    %115 = vector.shape_cast %114 : vector<16x32xf32> to vector<2x8x32xf32>
    %c0_26 = arith.constant 0 : index
    %c0_27 = arith.constant 0 : index
    %c0_28 = arith.constant 0 : index
    %116 = vector.load %arg4[%c0_26, %c0_27, %c0_28] : memref<2x8x32xf32, #tpu.memory_space<vmem>>, vector<2x8x32xf32>
    tpu.vector_store %arg4[%c0_26, %c0_27, %c0_28], %115 {strides = array<i32>} : memref<2x8x32xf32, #tpu.memory_space<vmem>>, vector<2x8x32xf32>,
    return
  }
  func.func @transform_0(%arg0: i32) -> (i32, i32, i32) {
    %c0_i32 = arith.constant 0 : i32
    %c0_i32_0 = arith.constant 0 : i32
    %c0_i32_1 = arith.constant 0 : i32
    %c0_i32_2 = arith.constant 0 : i32
    return %c0_i32, %c0_i32_0, %c0_i32_1 : i32, i32, i32
  }
  func.func @transform_1(%arg0: i32) -> (i32, i32, i32) {
    %c0_i32 = arith.constant 0 : i32
    %c0_i32_0 = arith.constant 0 : i32
    %c0_i32_1 = arith.constant 0 : i32
    %c0_i32_2 = arith.constant 0 : i32
    return %c0_i32, %c0_i32_0, %c0_i32_1 : i32, i32, i32
  }
  func.func @transform_2(%arg0: i32) -> (i32, i32) {
    %c0_i32 = arith.constant 0 : i32
    %c0_i32_0 = arith.constant 0 : i32
    %c0_i32_1 = arith.constant 0 : i32
    return %c0_i32, %c0_i32_0 : i32, i32
  }
  func.func @transform_3(%arg0: i32) -> (i32, i32, i32) {
    %c0_i32 = arith.constant 0 : i32
    %c0_i32_0 = arith.constant 0 : i32
    %c0_i32_1 = arith.constant 0 : i32
    %c0_i32_2 = arith.constant 0 : i32
    return %c0_i32, %c0_i32_0, %c0_i32_1 : i32, i32, i32
  }
}

</mosaic_0001>

<llo_original>
// kernel: tpu_custom_call.1
$region0: #{tpu_custom_call.1}
  #allocation0 [shape = 'u32[]', space=smem, size = 0x4, offset = 0x4, fixed_abs, tag = 'smem constant byte address 0x4 - core index']
  #allocation1 [shape = 'u32[144,128]{1,0:T(1,128)}', space=vmem, size = 0x12000, scoped, tag = 'internal scratch']
  %s0 = inlined_call_operand.hbm [shape: f32[2,8,32], index: 0, kind: input, shape index: {}]
  %s1 = inlined_call_operand.hbm [shape: f32[8,8,8], index: 1, kind: input, shape index: {}]
  %s2 = inlined_call_operand.hbm [shape: f32[136,96], index: 2, kind: input, shape index: {}]
  %s3 = inlined_call_operand.hbm [shape: f32[2,8,32], index: 3, kind: output, shape index: {}]
  %s4 = sld [smem:[#allocation0]]
  $region34: #{tpu_custom_call.1} parent=0
    _
  %s6 = ssub.s32 1, %s4
  %s7 = scalar_select 0, %s6, %s4
  $region1: #{tpu_custom_call.1} parent=0
    #allocation2 [shape = 'u8[8192]{0}', space=vmem, size = 0x2000, scoped, tag = 'input window, operand 0, single buffered']
    #allocation3 [shape = 's32[1]{0}', space=sflag, size = 0x4, scoped, tag = 'scoped memory for tpu_custom_call.1']
    #allocation4 [shape = 's32[1]{0}', space=sflag, size = 0x4, scoped, tag = 'scoped memory for tpu_custom_call.1']
    #allocation5 [shape = 'u8[32768]{0}', space=vmem, size = 0x8000, scoped, tag = 'input window, operand 1, single buffered']
    #allocation6 [shape = 's32[1]{0}', space=sflag, size = 0x4, scoped, tag = 'scoped memory for tpu_custom_call.1']
    #allocation7 [shape = 'u8[69632]{0}', space=vmem, size = 0x11000, scoped, tag = 'input window, operand 2, single buffered']
    #allocation8 [shape = 'u8[8192]{0}', space=vmem, size = 0x2000, scoped, tag = 'output window, operand 0, single buffered']
    %8 = vsyncpa [#allocation3], 0
    %9 = vsyncpa [#allocation6], 0
    %10 = vsyncpa [#allocation4], 0
    // Predicated region
    $region2: #{tpu_custom_call.1} parent=1 // pred_check
      _
    $region3: #{tpu_custom_call.1} parent=1 // pred_check_branch
      %12 = sbr.rel (0) target = $region5
    $region4: #{tpu_custom_call.1} parent=1 // pred_region
      %s14 = ssub.s32 256, 256
      %15 = vsyncadd [#allocation3], %s14
      %s16 = sshll.u32 [#allocation2], 4
      %s17 = int_to_ptr.vmem [resolvable:$true] %s16
      %22 = dma.hbm_to_vmem [thread:$0]  %s0, 256, %s17, [#allocation3], 128, 128, 8
    $region5: #{tpu_custom_call.1} parent=1 // pred_fallthru
      _
    // Predicated region
    $region6: #{tpu_custom_call.1} parent=1 // pred_check
      _
    $region7: #{tpu_custom_call.1} parent=1 // pred_check_branch
      %24 = sbr.rel (0) target = $region9
    $region8: #{tpu_custom_call.1} parent=1 // pred_region
      %s26 = ssub.s32 1024, 1024
      %27 = vsyncadd [#allocation6], %s26
      %s28 = sshll.u32 [#allocation5], 4
      %s29 = int_to_ptr.vmem [resolvable:$true] %s28
      %34 = dma.hbm_to_vmem [thread:$0]  %s1, 1024, %s29, [#allocation6], 128, 128, 8
    $region9: #{tpu_custom_call.1} parent=1 // pred_fallthru
      _
    // Predicated region
    $region10: #{tpu_custom_call.1} parent=1 // pred_check
      _
    $region11: #{tpu_custom_call.1} parent=1 // pred_check_branch
      %36 = sbr.rel (0) target = $region13
    $region12: #{tpu_custom_call.1} parent=1 // pred_region
      %s38 = ssub.s32 2176, 2176
      %39 = vsyncadd [#allocation6], %s38
      %s40 = sshll.u32 [#allocation7], 4
      %s41 = int_to_ptr.vmem [resolvable:$true] %s40
      %46 = dma.hbm_to_vmem [thread:$0]  %s2, 2176, %s41, [#allocation6], 128, 128, 8
    $region13: #{tpu_custom_call.1} parent=1 // pred_fallthru
      _
    // Predicated region
    $region14: #{tpu_custom_call.1} parent=1 // pred_check
      _
    $region15: #{tpu_custom_call.1} parent=1 // pred_check_branch
      %48 = sbr.rel (0) target = $region17
    $region16: #{tpu_custom_call.1} parent=1 // pred_region
      %49 = dma.done [#allocation3], 256
    $region17: #{tpu_custom_call.1} parent=1 // pred_fallthru
      _
    // Predicated region
    $region18: #{tpu_custom_call.1} parent=1 // pred_check
      _
    $region19: #{tpu_custom_call.1} parent=1 // pred_check_branch
      %51 = sbr.rel (0) target = $region21
    $region20: #{tpu_custom_call.1} parent=1 // pred_region
      %52 = dma.done [#allocation6], 1024
    $region21: #{tpu_custom_call.1} parent=1 // pred_fallthru
      _
    // Predicated region
    $region22: #{tpu_custom_call.1} parent=1 // pred_check
      _
    $region23: #{tpu_custom_call.1} parent=1 // pred_check_branch
      %54 = sbr.rel (0) target = $region25
    $region24: #{tpu_custom_call.1} parent=1 // pred_region
      %55 = dma.done [#allocation6], 2176
    $region25: #{tpu_custom_call.1} parent=1 // pred_fallthru
      _
    %v56 = vld [vmem:[#allocation7] sm:$0xff]
    %v57 = vld [vmem:[#allocation7 + $0x8] sm:$0xff]
    %v58 = vld [vmem:[#allocation7 + $0x10] sm:$0xff]
    %v59 = vld [vmem:[#allocation7 + $0x18] sm:$0xff]
    %v60 = vld [vmem:[#allocation7 + $0x20] sm:$0xff]
    %v61 = vld [vmem:[#allocation7 + $0x28] sm:$0xff]
    %v62 = vld [vmem:[#allocation7 + $0x30] sm:$0xff]
    %v63 = vld [vmem:[#allocation7 + $0x38] sm:$0xff]
    %v64 = vld [vmem:[#allocation7 + $0x40] sm:$0xff]
    %v65 = vld [vmem:[#allocation7 + $0x48] sm:$0xff]
    %v66 = vld [vmem:[#allocation7 + $0x50] sm:$0xff]
    %v67 = vld [vmem:[#allocation7 + $0x58] sm:$0xff]
    %v68 = vld [vmem:[#allocation7 + $0x60] sm:$0xff]
    %v69 = vld [vmem:[#allocation7 + $0x68] sm:$0xff]
    %v70 = vld [vmem:[#allocation7 + $0x70] sm:$0xff]
    %v71 = vld [vmem:[#allocation7 + $0x78] sm:$0xff]
    %v72 = vld [vmem:[#allocation7 + $0x80] sm:$0xff]
    %v73 = vld [vmem:[#allocation2] sm:$0xff]
    %v74 = vld [vmem:[#allocation2 + $0x8] sm:$0xff]
    %vm75 = vcmask 261120
    %v76 = vsel %vm75, %v73, 0.0
    %77 = vadd.xlane.f32.xlu0 %v76
    %v78 = vpop.xlane.xlu0 %77
    %v79 = vsel %vm75, %v74, 0.0
    %80 = vadd.xlane.f32.xlu0 %v79
    %v81 = vpop.xlane.xlu0 %80
    %v82 = vrcp.pop 32.0
    %v83 = vmul.f32 %v78, %v82
    %v84 = vmul.f32 %v81, %v82
    %v85 = vsub.f32 %v73, %v83
    %v86 = vsub.f32 %v74, %v84
    %v87 = vmul.f32 %v85, %v85
    %v88 = vmul.f32 %v86, %v86
    %v89 = vsel %vm75, %v87, 0.0
    %90 = vadd.xlane.f32.xlu0 %v89
    %v91 = vpop.xlane.xlu0 %90
    %v92 = vsel %vm75, %v88, 0.0
    %93 = vadd.xlane.f32.xlu0 %v92
    %v94 = vpop.xlane.xlu0 %93
    %v95 = vrcp.pop 31.0
    %v96 = vmul.f32 %v91, %v95
    %v97 = vmul.f32 %v94, %v95
    %v98 = vrsqrt.pop %v96
    %v99 = vmul.f32 %v96, %v98
    %vm100 = vcmp.eq.f32.partialorder %v96, inf
    %v101 = vsel %vm100, %v96, %v99
    %vm102 = vcmp.eq.f32.partialorder %v96, 0.0
    %v103 = vand.u32 %v96, 2147483648
    %v104 = vsel %vm102, %v103, %v101
    %v105 = vrsqrt.pop %v97
    %v106 = vmul.f32 %v97, %v105
    %vm107 = vcmp.eq.f32.partialorder %v97, inf
    %v108 = vsel %vm107, %v97, %v106
    %vm109 = vcmp.eq.f32.partialorder %v97, 0.0
    %v110 = vand.u32 %v97, 2147483648
    %v111 = vsel %vm109, %v110, %v108
    %v112 = vlaneseq
    %v113 = vshrl.u32 %v112, 7
    %v114 = vsub.s32 4, %v113
    %v115 = vrot.slane %v72, %v114
    %v116 = vmul.f32 %v115, %v85
    %v117 = vmul.f32 %v115, %v86
    %v118 = vadd.f32 %v104, 1e-06
    %v119 = vadd.f32 %v111, 1e-06
    %v120 = vrcp.pop %v118
    %v121 = vmul.f32 %v116, %v120
    %v122 = vrcp.pop %v119
    %v123 = vmul.f32 %v117, %v122
    %v124 = vlaneseq
    %v125 = vshrl.u32 %v124, 7
    %v126 = vsub.s32 5, %v125
    %v127 = vrot.slane %v72, %v126
    %v128 = vadd.f32 %v121, %v127
    %v129 = vadd.f32 %v123, %v127
    %v130 = vlaneseq
    %v131 = vshrl.u32 %v130, 7
    %v132 = vsub.s32 0, %v131
    %v133 = vrot.slane %v72, %v132
    %v135 = vsel %vm75, %v128, 0
    %v138 = vsel %vm75, %v129, 0
    %140 = vmatprep.subr.mxu0 0.0
    %141 = vmatpush1.msra.mxu0 %v56
    %142 = vmatprep.subr.mxu0 0.0
    %143 = vmatpush1.msra.mxu0 %v57
    %144 = vmatprep.subr.mxu0 0.0
    %145 = vmatpush1.msra.mxu0 %v58
    %146 = vmatprep.subr.mxu0 0.0
    %147 = vmatpush1.msra.mxu0 %v59
    %148 = vmatprep.subr.mxu0 0.0
    %149 = vmatpush1.msra.mxu0 0.0
    %150 = vmatprep.subr.mxu0 0.0
    %151 = vmatpush1.msra.mxu0 0.0
    %152 = vmatprep.subr.mxu0 0.0
    %153 = vmatpush1.msra.mxu0 0.0
    %154 = vmatprep.subr.mxu0 0.0
    %155 = vmatpush1.msra.mxu0 0.0
    %156 = vmatprep.subr.mxu0 0.0
    %157 = vmatpush1.msra.mxu0 0.0
    %158 = vmatprep.subr.mxu0 0.0
    %159 = vmatpush1.msra.mxu0 0.0
    %160 = vmatprep.subr.mxu0 0.0
    %161 = vmatpush1.msra.mxu0 0.0
    %162 = vmatprep.subr.mxu0 0.0
    %163 = vmatpush1.msra.mxu0 0.0
    %164 = vmatprep.subr.mxu0 0.0
    %165 = vmatpush1.msra.mxu0 0.0
    %166 = vmatprep.subr.mxu0 0.0
    %167 = vmatpush1.msra.mxu0 0.0
    %168 = vmatprep.subr.mxu0 0.0
    %169 = vmatpush1.msra.mxu0 0.0
    %170 = vmatprep.subr.mxu0 0.0
    %171 = vmatpush1.msra.mxu0 0.0
    %172 = vmatprep.subr.mxu0 0.0
    %173 = vmatpush1.msra.mxu0 0.0
    %174 = vmatprep.subr.mxu0 0.0
    %175 = vmatpush1.msra.mxu0 0.0
    %176 = vmatprep.subr.mxu0 0.0
    %177 = vmatpush1.msra.mxu0 0.0
    %178 = vmatprep.subr.mxu0 0.0
    %179 = vmatpush1.msra.mxu0 0.0
    %180 = vmatprep.subr.mxu0 0.0
    %181 = vmatpush1.msra.mxu0 0.0
    %182 = vmatprep.subr.mxu0 0.0
    %183 = vmatpush1.msra.mxu0 0.0
    %184 = vmatprep.subr.mxu0 0.0
    %185 = vmatpush1.msra.mxu0 0.0
    %186 = vmatprep.subr.mxu0 0.0
    %187 = vmatpush1.msra.mxu0 0.0
    %188 = vmatprep.subr.mxu0 0.0
    %189 = vmatpush1.msra.mxu0 0.0
    %190 = vmatprep.subr.mxu0 0.0
    %191 = vmatpush1.msra.mxu0 0.0
    %192 = vmatprep.subr.mxu0 0.0
    %193 = vmatpush1.msra.mxu0 0.0
    %194 = vmatprep.subr.mxu0 0.0
    %195 = vmatpush1.msra.mxu0 0.0
    %196 = vmatprep.subr.mxu0 0.0
    %197 = vmatpush1.msra.mxu0 0.0
    %198 = vmatprep.subr.mxu0 0.0
    %199 = vmatpush1.msra.mxu0 0.0
    %200 = vmatprep.subr.mxu0 0.0
    %201 = vmatpush1.msra.mxu0 0.0
    %202 = vmatprep.subr.mxu0 0.0
    %203 = vmatpush1.msra.mxu0 0.0
    %204 = vmatprep.mubr.f32.mxu0 0.0
    %205 = vmatmul.mubr.f32.gmra.mrb[0].mxu0 %v135
    %v206 = vpop.f32.mrb[0].mxu0
    %v207 = vadd.f32 %v133, %v206
    %v208 = vpop.f32.mrb[0].mxu0
    %209 = vmatprep.mubr.f32.mxu0 0.0
    %210 = vmatmul.mubr.f32.gmra.mrb[0].mxu0 %v138
    %v211 = vpop.f32.mrb[0].mxu0
    %v212 = vadd.f32 %v133, %v211
    %v213 = vpop.f32.mrb[0].mxu0
    %214 = vdwg.mxu0
    %217 = vrot.lane.b32.xlu0 %v207, 120
    %v218 = vpop.permute.xlu0 %217
    %219 = vrot.lane.b32.xlu0 %v212, 120
    %v220 = vpop.permute.xlu0 %219
    %221 = vrot.lane.b32.xlu0 %v207, 112
    %v222 = vpop.permute.xlu0 %221
    %223 = vrot.lane.b32.xlu0 %v212, 112
    %v224 = vpop.permute.xlu0 %223
    %225 = vrot.lane.b32.xlu0 %v207, 104
    %v226 = vpop.permute.xlu0 %225
    %227 = vrot.lane.b32.xlu0 %v212, 104
    %v228 = vpop.permute.xlu0 %227
    %v229 = vld [vmem:[#allocation5] sm:$0xff]
    %v230 = vld [vmem:[#allocation5 + $0x8] sm:$0xff]
    %v231 = vld [vmem:[#allocation5 + $0x10] sm:$0xff]
    %v232 = vld [vmem:[#allocation5 + $0x18] sm:$0xff]
    %v233 = vld [vmem:[#allocation5 + $0x20] sm:$0xff]
    %v234 = vld [vmem:[#allocation5 + $0x28] sm:$0xff]
    %v235 = vld [vmem:[#allocation5 + $0x30] sm:$0xff]
    %v236 = vld [vmem:[#allocation5 + $0x38] sm:$0xff]
    %237 = vrot.lane.b32.xlu0 %v207, 96
    %v238 = vpop.permute.xlu0 %237
    %vm239 = vcmask 64512
    %v240 = vsel %vm239, %v207, 0
    %v242 = vsel %vm239, %v238, 0
    %244 = vmatprep.subr.mxu0 0.0
    %245 = vmatpush1.xpose.msra.mxu0 %v242
    %246 = vmatprep.subr.mxu0 0.0
    %247 = vmatpush1.xpose.msra.mxu0 0.0
    %248 = vmatprep.subr.mxu0 0.0
    %249 = vmatpush1.xpose.msra.mxu0 0.0
    %250 = vmatprep.subr.mxu0 0.0
    %251 = vmatpush1.xpose.msra.mxu0 0.0
    %252 = vmatprep.subr.mxu0 0.0
    %253 = vmatpush1.xpose.msra.mxu0 0.0
    %254 = vmatprep.subr.mxu0 0.0
    %255 = vmatpush1.xpose.msra.mxu0 0.0
    %256 = vmatprep.subr.mxu0 0.0
    %257 = vmatpush1.xpose.msra.mxu0 0.0
    %258 = vmatprep.subr.mxu0 0.0
    %259 = vmatpush1.xpose.msra.mxu0 0.0
    %260 = vmatprep.subr.mxu0 0.0
    %261 = vmatpush1.xpose.msra.mxu0 0.0
    %262 = vmatprep.subr.mxu0 0.0
    %263 = vmatpush1.xpose.msra.mxu0 0.0
    %264 = vmatprep.subr.mxu0 0.0
    %265 = vmatpush1.xpose.msra.mxu0 0.0
    %266 = vmatprep.subr.mxu0 0.0
    %267 = vmatpush1.xpose.msra.mxu0 0.0
    %268 = vmatprep.subr.mxu0 0.0
    %269 = vmatpush1.xpose.msra.mxu0 0.0
    %270 = vmatprep.subr.mxu0 0.0
    %271 = vmatpush1.xpose.msra.mxu0 0.0
    %272 = vmatprep.subr.mxu0 0.0
    %273 = vmatpush1.xpose.msra.mxu0 0.0
    %274 = vmatprep.subr.mxu0 0.0
    %275 = vmatpush1.xpose.msra.mxu0 0.0
    %276 = vmatprep.subr.mxu0 0.0
    %277 = vmatpush1.xpose.msra.mxu0 0.0
    %278 = vmatprep.subr.mxu0 0.0
    %279 = vmatpush1.xpose.msra.mxu0 0.0
    %280 = vmatprep.subr.mxu0 0.0
    %281 = vmatpush1.xpose.msra.mxu0 0.0
    %282 = vmatprep.subr.mxu0 0.0
    %283 = vmatpush1.xpose.msra.mxu0 0.0
    %284 = vmatprep.subr.mxu0 0.0
    %285 = vmatpush1.xpose.msra.mxu0 0.0
    %286 = vmatprep.subr.mxu0 0.0
    %287 = vmatpush1.xpose.msra.mxu0 0.0
    %288 = vmatprep.subr.mxu0 0.0
    %289 = vmatpush1.xpose.msra.mxu0 0.0
    %290 = vmatprep.subr.mxu0 0.0
    %291 = vmatpush1.xpose.msra.mxu0 0.0
    %292 = vmatprep.subr.mxu0 0.0
    %293 = vmatpush1.xpose.msra.mxu0 0.0
    %294 = vmatprep.subr.mxu0 0.0
    %295 = vmatpush1.xpose.msra.mxu0 0.0
    %296 = vmatprep.subr.mxu0 0.0
    %297 = vmatpush1.xpose.msra.mxu0 0.0
    %298 = vmatprep.subr.mxu0 0.0
    %299 = vmatpush1.xpose.msra.mxu0 0.0
    %300 = vmatprep.subr.mxu0 0.0
    %301 = vmatpush1.xpose.msra.mxu0 0.0
    %302 = vmatprep.subr.mxu0 0.0
    %303 = vmatpush1.xpose.msra.mxu0 0.0
    %304 = vmatprep.subr.mxu0 0.0
    %305 = vmatpush1.xpose.msra.mxu0 0.0
    %306 = vmatprep.subr.mxu0 0.0
    %307 = vmatpush1.xpose.msra.mxu0 0.0
    %308 = vmatprep.mubr.f32.mxu0 0.0
    %309 = vmatmul.mubr.f32.gmra.mrb[0].mxu0 %v240
    %v310 = vpop.f32.mrb[0].mxu0
    %v311 = vadd.f32 %v229, %v310
    %v312 = vpop.f32.mrb[0].mxu0
    %313 = vdwg.mxu0
    %314 = vrot.lane.b32.xlu0 %v212, 96
    %v315 = vpop.permute.xlu0 %314
    %v316 = vsel %vm239, %v212, 0
    %v318 = vsel %vm239, %v315, 0
    %320 = vmatprep.subr.mxu0 0.0
    %321 = vmatpush1.xpose.msra.mxu0 %v318
    %322 = vmatprep.subr.mxu0 0.0
    %323 = vmatpush1.xpose.msra.mxu0 0.0
    %324 = vmatprep.subr.mxu0 0.0
    %325 = vmatpush1.xpose.msra.mxu0 0.0
    %326 = vmatprep.subr.mxu0 0.0
    %327 = vmatpush1.xpose.msra.mxu0 0.0
    %328 = vmatprep.subr.mxu0 0.0
    %329 = vmatpush1.xpose.msra.mxu0 0.0
    %330 = vmatprep.subr.mxu0 0.0
    %331 = vmatpush1.xpose.msra.mxu0 0.0
    %332 = vmatprep.subr.mxu0 0.0
    %333 = vmatpush1.xpose.msra.mxu0 0.0
    %334 = vmatprep.subr.mxu0 0.0
    %335 = vmatpush1.xpose.msra.mxu0 0.0
    %336 = vmatprep.subr.mxu0 0.0
    %337 = vmatpush1.xpose.msra.mxu0 0.0
    %338 = vmatprep.subr.mxu0 0.0
    %339 = vmatpush1.xpose.msra.mxu0 0.0
    %340 = vmatprep.subr.mxu0 0.0
    %341 = vmatpush1.xpose.msra.mxu0 0.0
    %342 = vmatprep.subr.mxu0 0.0
    %343 = vmatpush1.xpose.msra.mxu0 0.0
    %344 = vmatprep.subr.mxu0 0.0
    %345 = vmatpush1.xpose.msra.mxu0 0.0
    %346 = vmatprep.subr.mxu0 0.0
    %347 = vmatpush1.xpose.msra.mxu0 0.0
    %348 = vmatprep.subr.mxu0 0.0
    %349 = vmatpush1.xpose.msra.mxu0 0.0
    %350 = vmatprep.subr.mxu0 0.0
    %351 = vmatpush1.xpose.msra.mxu0 0.0
    %352 = vmatprep.subr.mxu0 0.0
    %353 = vmatpush1.xpose.msra.mxu0 0.0
    %354 = vmatprep.subr.mxu0 0.0
    %355 = vmatpush1.xpose.msra.mxu0 0.0
    %356 = vmatprep.subr.mxu0 0.0
    %357 = vmatpush1.xpose.msra.mxu0 0.0
    %358 = vmatprep.subr.mxu0 0.0
    %359 = vmatpush1.xpose.msra.mxu0 0.0
    %360 = vmatprep.subr.mxu0 0.0
    %361 = vmatpush1.xpose.msra.mxu0 0.0
    %362 = vmatprep.subr.mxu0 0.0
    %363 = vmatpush1.xpose.msra.mxu0 0.0
    %364 = vmatprep.subr.mxu0 0.0
    %365 = vmatpush1.xpose.msra.mxu0 0.0
    %366 = vmatprep.subr.mxu0 0.0
    %367 = vmatpush1.xpose.msra.mxu0 0.0
    %368 = vmatprep.subr.mxu0 0.0
    %369 = vmatpush1.xpose.msra.mxu0 0.0
    %370 = vmatprep.subr.mxu0 0.0
    %371 = vmatpush1.xpose.msra.mxu0 0.0
    %372 = vmatprep.subr.mxu0 0.0
    %373 = vmatpush1.xpose.msra.mxu0 0.0
    %374 = vmatprep.subr.mxu0 0.0
    %375 = vmatpush1.xpose.msra.mxu0 0.0
    %376 = vmatprep.subr.mxu0 0.0
    %377 = vmatpush1.xpose.msra.mxu0 0.0
    %378 = vmatprep.subr.mxu0 0.0
    %379 = vmatpush1.xpose.msra.mxu0 0.0
    %380 = vmatprep.subr.mxu0 0.0
    %381 = vmatpush1.xpose.msra.mxu0 0.0
    %382 = vmatprep.subr.mxu0 0.0
    %383 = vmatpush1.xpose.msra.mxu0 0.0
    %384 = vmatprep.mubr.f32.mxu0 0.0
    %385 = vmatmul.mubr.f32.gmra.mrb[0].mxu0 %v316
    %v386 = vpop.f32.mrb[0].mxu0
    %v387 = vadd.f32 %v230, %v386
    %v388 = vpop.f32.mrb[0].mxu0
    %389 = vdwg.mxu0
    %390 = vrot.lane.b32.xlu0 %v218, 96
    %v391 = vpop.permute.xlu0 %390
    %v392 = vsel %vm239, %v218, 0
    %v394 = vsel %vm239, %v391, 0
    %396 = vmatprep.subr.mxu0 0.0
    %397 = vmatpush1.xpose.msra.mxu0 %v394
    %398 = vmatprep.subr.mxu0 0.0
    %399 = vmatpush1.xpose.msra.mxu0 0.0
    %400 = vmatprep.subr.mxu0 0.0
    %401 = vmatpush1.xpose.msra.mxu0 0.0
    %402 = vmatprep.subr.mxu0 0.0
    %403 = vmatpush1.xpose.msra.mxu0 0.0
    %404 = vmatprep.subr.mxu0 0.0
    %405 = vmatpush1.xpose.msra.mxu0 0.0
    %406 = vmatprep.subr.mxu0 0.0
    %407 = vmatpush1.xpose.msra.mxu0 0.0
    %408 = vmatprep.subr.mxu0 0.0
    %409 = vmatpush1.xpose.msra.mxu0 0.0
    %410 = vmatprep.subr.mxu0 0.0
    %411 = vmatpush1.xpose.msra.mxu0 0.0
    %412 = vmatprep.subr.mxu0 0.0
    %413 = vmatpush1.xpose.msra.mxu0 0.0
    %414 = vmatprep.subr.mxu0 0.0
    %415 = vmatpush1.xpose.msra.mxu0 0.0
    %416 = vmatprep.subr.mxu0 0.0
    %417 = vmatpush1.xpose.msra.mxu0 0.0
    %418 = vmatprep.subr.mxu0 0.0
    %419 = vmatpush1.xpose.msra.mxu0 0.0
    %420 = vmatprep.subr.mxu0 0.0
    %421 = vmatpush1.xpose.msra.mxu0 0.0
    %422 = vmatprep.subr.mxu0 0.0
    %423 = vmatpush1.xpose.msra.mxu0 0.0
    %424 = vmatprep.subr.mxu0 0.0
    %425 = vmatpush1.xpose.msra.mxu0 0.0
    %426 = vmatprep.subr.mxu0 0.0
    %427 = vmatpush1.xpose.msra.mxu0 0.0
    %428 = vmatprep.subr.mxu0 0.0
    %429 = vmatpush1.xpose.msra.mxu0 0.0
    %430 = vmatprep.subr.mxu0 0.0
    %431 = vmatpush1.xpose.msra.mxu0 0.0
    %432 = vmatprep.subr.mxu0 0.0
    %433 = vmatpush1.xpose.msra.mxu0 0.0
    %434 = vmatprep.subr.mxu0 0.0
    %435 = vmatpush1.xpose.msra.mxu0 0.0
    %436 = vmatprep.subr.mxu0 0.0
    %437 = vmatpush1.xpose.msra.mxu0 0.0
    %438 = vmatprep.subr.mxu0 0.0
    %439 = vmatpush1.xpose.msra.mxu0 0.0
    %440 = vmatprep.subr.mxu0 0.0
    %441 = vmatpush1.xpose.msra.mxu0 0.0
    %442 = vmatprep.subr.mxu0 0.0
    %443 = vmatpush1.xpose.msra.mxu0 0.0
    %444 = vmatprep.subr.mxu0 0.0
    %445 = vmatpush1.xpose.msra.mxu0 0.0
    %446 = vmatprep.subr.mxu0 0.0
    %447 = vmatpush1.xpose.msra.mxu0 0.0
    %448 = vmatprep.subr.mxu0 0.0
    %449 = vmatpush1.xpose.msra.mxu0 0.0
    %450 = vmatprep.subr.mxu0 0.0
    %451 = vmatpush1.xpose.msra.mxu0 0.0
    %452 = vmatprep.subr.mxu0 0.0
    %453 = vmatpush1.xpose.msra.mxu0 0.0
    %454 = vmatprep.subr.mxu0 0.0
    %455 = vmatpush1.xpose.msra.mxu0 0.0
    %456 = vmatprep.subr.mxu0 0.0
    %457 = vmatpush1.xpose.msra.mxu0 0.0
    %458 = vmatprep.subr.mxu0 0.0
    %459 = vmatpush1.xpose.msra.mxu0 0.0
    %460 = vmatprep.mubr.f32.mxu0 0.0
    %461 = vmatmul.mubr.f32.gmra.mrb[0].mxu0 %v392
    %v462 = vpop.f32.mrb[0].mxu0
    %v463 = vadd.f32 %v231, %v462
    %v464 = vpop.f32.mrb[0].mxu0
    %465 = vdwg.mxu0
    %466 = vrot.lane.b32.xlu0 %v220, 96
    %v467 = vpop.permute.xlu0 %466
    %v468 = vsel %vm239, %v220, 0
    %v470 = vsel %vm239, %v467, 0
    %472 = vmatprep.subr.mxu0 0.0
    %473 = vmatpush1.xpose.msra.mxu0 %v470
    %474 = vmatprep.subr.mxu0 0.0
    %475 = vmatpush1.xpose.msra.mxu0 0.0
    %476 = vmatprep.subr.mxu0 0.0
    %477 = vmatpush1.xpose.msra.mxu0 0.0
    %478 = vmatprep.subr.mxu0 0.0
    %479 = vmatpush1.xpose.msra.mxu0 0.0
    %480 = vmatprep.subr.mxu0 0.0
    %481 = vmatpush1.xpose.msra.mxu0 0.0
    %482 = vmatprep.subr.mxu0 0.0
    %483 = vmatpush1.xpose.msra.mxu0 0.0
    %484 = vmatprep.subr.mxu0 0.0
    %485 = vmatpush1.xpose.msra.mxu0 0.0
    %486 = vmatprep.subr.mxu0 0.0
    %487 = vmatpush1.xpose.msra.mxu0 0.0
    %488 = vmatprep.subr.mxu0 0.0
    %489 = vmatpush1.xpose.msra.mxu0 0.0
    %490 = vmatprep.subr.mxu0 0.0
    %491 = vmatpush1.xpose.msra.mxu0 0.0
    %492 = vmatprep.subr.mxu0 0.0
    %493 = vmatpush1.xpose.msra.mxu0 0.0
    %494 = vmatprep.subr.mxu0 0.0
    %495 = vmatpush1.xpose.msra.mxu0 0.0
    %496 = vmatprep.subr.mxu0 0.0
    %497 = vmatpush1.xpose.msra.mxu0 0.0
    %498 = vmatprep.subr.mxu0 0.0
    %499 = vmatpush1.xpose.msra.mxu0 0.0
    %500 = vmatprep.subr.mxu0 0.0
    %501 = vmatpush1.xpose.msra.mxu0 0.0
    %502 = vmatprep.subr.mxu0 0.0
    %503 = vmatpush1.xpose.msra.mxu0 0.0
    %504 = vmatprep.subr.mxu0 0.0
    %505 = vmatpush1.xpose.msra.mxu0 0.0
    %506 = vmatprep.subr.mxu0 0.0
    %507 = vmatpush1.xpose.msra.mxu0 0.0
    %508 = vmatprep.subr.mxu0 0.0
    %509 = vmatpush1.xpose.msra.mxu0 0.0
    %510 = vmatprep.subr.mxu0 0.0
    %511 = vmatpush1.xpose.msra.mxu0 0.0
    %512 = vmatprep.subr.mxu0 0.0
    %513 = vmatpush1.xpose.msra.mxu0 0.0
    %514 = vmatprep.subr.mxu0 0.0
    %515 = vmatpush1.xpose.msra.mxu0 0.0
    %516 = vmatprep.subr.mxu0 0.0
    %517 = vmatpush1.xpose.msra.mxu0 0.0
    %518 = vmatprep.subr.mxu0 0.0
    %519 = vmatpush1.xpose.msra.mxu0 0.0
    %520 = vmatprep.subr.mxu0 0.0
    %521 = vmatpush1.xpose.msra.mxu0 0.0
    %522 = vmatprep.subr.mxu0 0.0
    %523 = vmatpush1.xpose.msra.mxu0 0.0
    %524 = vmatprep.subr.mxu0 0.0
    %525 = vmatpush1.xpose.msra.mxu0 0.0
    %526 = vmatprep.subr.mxu0 0.0
    %527 = vmatpush1.xpose.msra.mxu0 0.0
    %528 = vmatprep.subr.mxu0 0.0
    %529 = vmatpush1.xpose.msra.mxu0 0.0
    %530 = vmatprep.subr.mxu0 0.0
    %531 = vmatpush1.xpose.msra.mxu0 0.0
    %532 = vmatprep.subr.mxu0 0.0
    %533 = vmatpush1.xpose.msra.mxu0 0.0
    %534 = vmatprep.subr.mxu0 0.0
    %535 = vmatpush1.xpose.msra.mxu0 0.0
    %536 = vmatprep.mubr.f32.mxu0 0.0
    %537 = vmatmul.mubr.f32.gmra.mrb[0].mxu0 %v468
    %v538 = vpop.f32.mrb[0].mxu0
    %v539 = vadd.f32 %v232, %v538
    %v540 = vpop.f32.mrb[0].mxu0
    %541 = vdwg.mxu0
    %542 = vrot.lane.b32.xlu0 %v222, 96
    %v543 = vpop.permute.xlu0 %542
    %v544 = vsel %vm239, %v222, 0
    %v546 = vsel %vm239, %v543, 0
    %548 = vmatprep.subr.mxu0 0.0
    %549 = vmatpush1.xpose.msra.mxu0 %v546
    %550 = vmatprep.subr.mxu0 0.0
    %551 = vmatpush1.xpose.msra.mxu0 0.0
    %552 = vmatprep.subr.mxu0 0.0
    %553 = vmatpush1.xpose.msra.mxu0 0.0
    %554 = vmatprep.subr.mxu0 0.0
    %555 = vmatpush1.xpose.msra.mxu0 0.0
    %556 = vmatprep.subr.mxu0 0.0
    %557 = vmatpush1.xpose.msra.mxu0 0.0
    %558 = vmatprep.subr.mxu0 0.0
    %559 = vmatpush1.xpose.msra.mxu0 0.0
    %560 = vmatprep.subr.mxu0 0.0
    %561 = vmatpush1.xpose.msra.mxu0 0.0
    %562 = vmatprep.subr.mxu0 0.0
    %563 = vmatpush1.xpose.msra.mxu0 0.0
    %564 = vmatprep.subr.mxu0 0.0
    %565 = vmatpush1.xpose.msra.mxu0 0.0
    %566 = vmatprep.subr.mxu0 0.0
    %567 = vmatpush1.xpose.msra.mxu0 0.0
    %568 = vmatprep.subr.mxu0 0.0
    %569 = vmatpush1.xpose.msra.mxu0 0.0
    %570 = vmatprep.subr.mxu0 0.0
    %571 = vmatpush1.xpose.msra.mxu0 0.0
    %572 = vmatprep.subr.mxu0 0.0
    %573 = vmatpush1.xpose.msra.mxu0 0.0
    %574 = vmatprep.subr.mxu0 0.0
    %575 = vmatpush1.xpose.msra.mxu0 0.0
    %576 = vmatprep.subr.mxu0 0.0
    %577 = vmatpush1.xpose.msra.mxu0 0.0
    %578 = vmatprep.subr.mxu0 0.0
    %579 = vmatpush1.xpose.msra.mxu0 0.0
    %580 = vmatprep.subr.mxu0 0.0
    %581 = vmatpush1.xpose.msra.mxu0 0.0
    %582 = vmatprep.subr.mxu0 0.0
    %583 = vmatpush1.xpose.msra.mxu0 0.0
    %584 = vmatprep.subr.mxu0 0.0
    %585 = vmatpush1.xpose.msra.mxu0 0.0
    %586 = vmatprep.subr.mxu0 0.0
    %587 = vmatpush1.xpose.msra.mxu0 0.0
    %588 = vmatprep.subr.mxu0 0.0
    %589 = vmatpush1.xpose.msra.mxu0 0.0
    %590 = vmatprep.subr.mxu0 0.0
    %591 = vmatpush1.xpose.msra.mxu0 0.0
    %592 = vmatprep.subr.mxu0 0.0
    %593 = vmatpush1.xpose.msra.mxu0 0.0
    %594 = vmatprep.subr.mxu0 0.0
    %595 = vmatpush1.xpose.msra.mxu0 0.0
    %596 = vmatprep.subr.mxu0 0.0
    %597 = vmatpush1.xpose.msra.mxu0 0.0
    %598 = vmatprep.subr.mxu0 0.0
    %599 = vmatpush1.xpose.msra.mxu0 0.0
    %600 = vmatprep.subr.mxu0 0.0
    %601 = vmatpush1.xpose.msra.mxu0 0.0
    %602 = vmatprep.subr.mxu0 0.0
    %603 = vmatpush1.xpose.msra.mxu0 0.0
    %604 = vmatprep.subr.mxu0 0.0
    %605 = vmatpush1.xpose.msra.mxu0 0.0
    %606 = vmatprep.subr.mxu0 0.0
    %607 = vmatpush1.xpose.msra.mxu0 0.0
    %608 = vmatprep.subr.mxu0 0.0
    %609 = vmatpush1.xpose.msra.mxu0 0.0
    %610 = vmatprep.subr.mxu0 0.0
    %611 = vmatpush1.xpose.msra.mxu0 0.0
    %612 = vmatprep.mubr.f32.mxu0 0.0
    %613 = vmatmul.mubr.f32.gmra.mrb[0].mxu0 %v544
    %v614 = vpop.f32.mrb[0].mxu0
    %v615 = vadd.f32 %v233, %v614
    %v616 = vpop.f32.mrb[0].mxu0
    %617 = vdwg.mxu0
    %618 = vrot.lane.b32.xlu0 %v224, 96
    %v619 = vpop.permute.xlu0 %618
    %v620 = vsel %vm239, %v224, 0
    %v622 = vsel %vm239, %v619, 0
    %624 = vmatprep.subr.mxu0 0.0
    %625 = vmatpush1.xpose.msra.mxu0 %v622
    %626 = vmatprep.subr.mxu0 0.0
    %627 = vmatpush1.xpose.msra.mxu0 0.0
    %628 = vmatprep.subr.mxu0 0.0
    %629 = vmatpush1.xpose.msra.mxu0 0.0
    %630 = vmatprep.subr.mxu0 0.0
    %631 = vmatpush1.xpose.msra.mxu0 0.0
    %632 = vmatprep.subr.mxu0 0.0
    %633 = vmatpush1.xpose.msra.mxu0 0.0
    %634 = vmatprep.subr.mxu0 0.0
    %635 = vmatpush1.xpose.msra.mxu0 0.0
    %636 = vmatprep.subr.mxu0 0.0
    %637 = vmatpush1.xpose.msra.mxu0 0.0
    %638 = vmatprep.subr.mxu0 0.0
    %639 = vmatpush1.xpose.msra.mxu0 0.0
    %640 = vmatprep.subr.mxu0 0.0
    %641 = vmatpush1.xpose.msra.mxu0 0.0
    %642 = vmatprep.subr.mxu0 0.0
    %643 = vmatpush1.xpose.msra.mxu0 0.0
    %644 = vmatprep.subr.mxu0 0.0
    %645 = vmatpush1.xpose.msra.mxu0 0.0
    %646 = vmatprep.subr.mxu0 0.0
    %647 = vmatpush1.xpose.msra.mxu0 0.0
    %648 = vmatprep.subr.mxu0 0.0
    %649 = vmatpush1.xpose.msra.mxu0 0.0
    %650 = vmatprep.subr.mxu0 0.0
    %651 = vmatpush1.xpose.msra.mxu0 0.0
    %652 = vmatprep.subr.mxu0 0.0
    %653 = vmatpush1.xpose.msra.mxu0 0.0
    %654 = vmatprep.subr.mxu0 0.0
    %655 = vmatpush1.xpose.msra.mxu0 0.0
    %656 = vmatprep.subr.mxu0 0.0
    %657 = vmatpush1.xpose.msra.mxu0 0.0
    %658 = vmatprep.subr.mxu0 0.0
    %659 = vmatpush1.xpose.msra.mxu0 0.0
    %660 = vmatprep.subr.mxu0 0.0
    %661 = vmatpush1.xpose.msra.mxu0 0.0
    %662 = vmatprep.subr.mxu0 0.0
    %663 = vmatpush1.xpose.msra.mxu0 0.0
    %664 = vmatprep.subr.mxu0 0.0
    %665 = vmatpush1.xpose.msra.mxu0 0.0
    %666 = vmatprep.subr.mxu0 0.0
    %667 = vmatpush1.xpose.msra.mxu0 0.0
    %668 = vmatprep.subr.mxu0 0.0
    %669 = vmatpush1.xpose.msra.mxu0 0.0
    %670 = vmatprep.subr.mxu0 0.0
    %671 = vmatpush1.xpose.msra.mxu0 0.0
    %672 = vmatprep.subr.mxu0 0.0
    %673 = vmatpush1.xpose.msra.mxu0 0.0
    %674 = vmatprep.subr.mxu0 0.0
    %675 = vmatpush1.xpose.msra.mxu0 0.0
    %676 = vmatprep.subr.mxu0 0.0
    %677 = vmatpush1.xpose.msra.mxu0 0.0
    %678 = vmatprep.subr.mxu0 0.0
    %679 = vmatpush1.xpose.msra.mxu0 0.0
    %680 = vmatprep.subr.mxu0 0.0
    %681 = vmatpush1.xpose.msra.mxu0 0.0
    %682 = vmatprep.subr.mxu0 0.0
    %683 = vmatpush1.xpose.msra.mxu0 0.0
    %684 = vmatprep.subr.mxu0 0.0
    %685 = vmatpush1.xpose.msra.mxu0 0.0
    %686 = vmatprep.subr.mxu0 0.0
    %687 = vmatpush1.xpose.msra.mxu0 0.0
    %688 = vmatprep.mubr.f32.mxu0 0.0
    %689 = vmatmul.mubr.f32.gmra.mrb[0].mxu0 %v620
    %v690 = vpop.f32.mrb[0].mxu0
    %v691 = vadd.f32 %v234, %v690
    %v692 = vpop.f32.mrb[0].mxu0
    %693 = vdwg.mxu0
    %694 = vrot.lane.b32.xlu0 %v226, 96
    %v695 = vpop.permute.xlu0 %694
    %v696 = vsel %vm239, %v226, 0
    %v698 = vsel %vm239, %v695, 0
    %700 = vmatprep.subr.mxu0 0.0
    %701 = vmatpush1.xpose.msra.mxu0 %v698
    %702 = vmatprep.subr.mxu0 0.0
    %703 = vmatpush1.xpose.msra.mxu0 0.0
    %704 = vmatprep.subr.mxu0 0.0
    %705 = vmatpush1.xpose.msra.mxu0 0.0
    %706 = vmatprep.subr.mxu0 0.0
    %707 = vmatpush1.xpose.msra.mxu0 0.0
    %708 = vmatprep.subr.mxu0 0.0
    %709 = vmatpush1.xpose.msra.mxu0 0.0
    %710 = vmatprep.subr.mxu0 0.0
    %711 = vmatpush1.xpose.msra.mxu0 0.0
    %712 = vmatprep.subr.mxu0 0.0
    %713 = vmatpush1.xpose.msra.mxu0 0.0
    %714 = vmatprep.subr.mxu0 0.0
    %715 = vmatpush1.xpose.msra.mxu0 0.0
    %716 = vmatprep.subr.mxu0 0.0
    %717 = vmatpush1.xpose.msra.mxu0 0.0
    %718 = vmatprep.subr.mxu0 0.0
    %719 = vmatpush1.xpose.msra.mxu0 0.0
    %720 = vmatprep.subr.mxu0 0.0
    %721 = vmatpush1.xpose.msra.mxu0 0.0
    %722 = vmatprep.subr.mxu0 0.0
    %723 = vmatpush1.xpose.msra.mxu0 0.0
    %724 = vmatprep.subr.mxu0 0.0
    %725 = vmatpush1.xpose.msra.mxu0 0.0
    %726 = vmatprep.subr.mxu0 0.0
    %727 = vmatpush1.xpose.msra.mxu0 0.0
    %728 = vmatprep.subr.mxu0 0.0
    %729 = vmatpush1.xpose.msra.mxu0 0.0
    %730 = vmatprep.subr.mxu0 0.0
    %731 = vmatpush1.xpose.msra.mxu0 0.0
    %732 = vmatprep.subr.mxu0 0.0
    %733 = vmatpush1.xpose.msra.mxu0 0.0
    %734 = vmatprep.subr.mxu0 0.0
    %735 = vmatpush1.xpose.msra.mxu0 0.0
    %736 = vmatprep.subr.mxu0 0.0
    %737 = vmatpush1.xpose.msra.mxu0 0.0
    %738 = vmatprep.subr.mxu0 0.0
    %739 = vmatpush1.xpose.msra.mxu0 0.0
    %740 = vmatprep.subr.mxu0 0.0
    %741 = vmatpush1.xpose.msra.mxu0 0.0
    %742 = vmatprep.subr.mxu0 0.0
    %743 = vmatpush1.xpose.msra.mxu0 0.0
    %744 = vmatprep.subr.mxu0 0.0
    %745 = vmatpush1.xpose.msra.mxu0 0.0
    %746 = vmatprep.subr.mxu0 0.0
    %747 = vmatpush1.xpose.msra.mxu0 0.0
    %748 = vmatprep.subr.mxu0 0.0
    %749 = vmatpush1.xpose.msra.mxu0 0.0
    %750 = vmatprep.subr.mxu0 0.0
    %751 = vmatpush1.xpose.msra.mxu0 0.0
    %752 = vmatprep.subr.mxu0 0.0
    %753 = vmatpush1.xpose.msra.mxu0 0.0
    %754 = vmatprep.subr.mxu0 0.0
    %755 = vmatpush1.xpose.msra.mxu0 0.0
    %756 = vmatprep.subr.mxu0 0.0
    %757 = vmatpush1.xpose.msra.mxu0 0.0
    %758 = vmatprep.subr.mxu0 0.0
    %759 = vmatpush1.xpose.msra.mxu0 0.0
    %760 = vmatprep.subr.mxu0 0.0
    %761 = vmatpush1.xpose.msra.mxu0 0.0
    %762 = vmatprep.subr.mxu0 0.0
    %763 = vmatpush1.xpose.msra.mxu0 0.0
    %764 = vmatprep.mubr.f32.mxu0 0.0
    %765 = vmatmul.mubr.f32.gmra.mrb[0].mxu0 %v696
    %v766 = vpop.f32.mrb[0].mxu0
    %v767 = vadd.f32 %v235, %v766
    %v768 = vpop.f32.mrb[0].mxu0
    %769 = vdwg.mxu0
    %770 = vrot.lane.b32.xlu0 %v228, 96
    %v771 = vpop.permute.xlu0 %770
    %v772 = vsel %vm239, %v228, 0
    %v774 = vsel %vm239, %v771, 0
    %776 = vmatprep.subr.mxu0 0.0
    %777 = vmatpush1.xpose.msra.mxu0 %v774
    %778 = vmatprep.subr.mxu0 0.0
    %779 = vmatpush1.xpose.msra.mxu0 0.0
    %780 = vmatprep.subr.mxu0 0.0
    %781 = vmatpush1.xpose.msra.mxu0 0.0
    %782 = vmatprep.subr.mxu0 0.0
    %783 = vmatpush1.xpose.msra.mxu0 0.0
    %784 = vmatprep.subr.mxu0 0.0
    %785 = vmatpush1.xpose.msra.mxu0 0.0
    %786 = vmatprep.subr.mxu0 0.0
    %787 = vmatpush1.xpose.msra.mxu0 0.0
    %788 = vmatprep.subr.mxu0 0.0
    %789 = vmatpush1.xpose.msra.mxu0 0.0
    %790 = vmatprep.subr.mxu0 0.0
    %791 = vmatpush1.xpose.msra.mxu0 0.0
    %792 = vmatprep.subr.mxu0 0.0
    %793 = vmatpush1.xpose.msra.mxu0 0.0
    %794 = vmatprep.subr.mxu0 0.0
    %795 = vmatpush1.xpose.msra.mxu0 0.0
    %796 = vmatprep.subr.mxu0 0.0
    %797 = vmatpush1.xpose.msra.mxu0 0.0
    %798 = vmatprep.subr.mxu0 0.0
    %799 = vmatpush1.xpose.msra.mxu0 0.0
    %800 = vmatprep.subr.mxu0 0.0
    %801 = vmatpush1.xpose.msra.mxu0 0.0
    %802 = vmatprep.subr.mxu0 0.0
    %803 = vmatpush1.xpose.msra.mxu0 0.0
    %804 = vmatprep.subr.mxu0 0.0
    %805 = vmatpush1.xpose.msra.mxu0 0.0
    %806 = vmatprep.subr.mxu0 0.0
    %807 = vmatpush1.xpose.msra.mxu0 0.0
    %808 = vmatprep.subr.mxu0 0.0
    %809 = vmatpush1.xpose.msra.mxu0 0.0
    %810 = vmatprep.subr.mxu0 0.0
    %811 = vmatpush1.xpose.msra.mxu0 0.0
    %812 = vmatprep.subr.mxu0 0.0
    %813 = vmatpush1.xpose.msra.mxu0 0.0
    %814 = vmatprep.subr.mxu0 0.0
    %815 = vmatpush1.xpose.msra.mxu0 0.0
    %816 = vmatprep.subr.mxu0 0.0
    %817 = vmatpush1.xpose.msra.mxu0 0.0
    %818 = vmatprep.subr.mxu0 0.0
    %819 = vmatpush1.xpose.msra.mxu0 0.0
    %820 = vmatprep.subr.mxu0 0.0
    %821 = vmatpush1.xpose.msra.mxu0 0.0
    %822 = vmatprep.subr.mxu0 0.0
    %823 = vmatpush1.xpose.msra.mxu0 0.0
    %824 = vmatprep.subr.mxu0 0.0
    %825 = vmatpush1.xpose.msra.mxu0 0.0
    %826 = vmatprep.subr.mxu0 0.0
    %827 = vmatpush1.xpose.msra.mxu0 0.0
    %828 = vmatprep.subr.mxu0 0.0
    %829 = vmatpush1.xpose.msra.mxu0 0.0
    %830 = vmatprep.subr.mxu0 0.0
    %831 = vmatpush1.xpose.msra.mxu0 0.0
    %832 = vmatprep.subr.mxu0 0.0
    %833 = vmatpush1.xpose.msra.mxu0 0.0
    %834 = vmatprep.subr.mxu0 0.0
    %835 = vmatpush1.xpose.msra.mxu0 0.0
    %836 = vmatprep.subr.mxu0 0.0
    %837 = vmatpush1.xpose.msra.mxu0 0.0
    %838 = vmatprep.subr.mxu0 0.0
    %839 = vmatpush1.xpose.msra.mxu0 0.0
    %840 = vmatprep.mubr.f32.mxu0 0.0
    %841 = vmatmul.mubr.f32.gmra.mrb[0].mxu0 %v772
    %v842 = vpop.f32.mrb[0].mxu0
    %v843 = vadd.f32 %v236, %v842
    %v844 = vpop.f32.mrb[0].mxu0
    %845 = vdwg.mxu0
    %v846 = vsel %vm239, %v311, -inf
    %847 = vmax.xlane.f32.xlu0 %v846
    %v848 = vpop.xlane.xlu0 %847
    %v849 = vsel %vm239, %v387, -inf
    %850 = vmax.xlane.f32.xlu0 %v849
    %v851 = vpop.xlane.xlu0 %850
    %v852 = vsel %vm239, %v463, -inf
    %853 = vmax.xlane.f32.xlu0 %v852
    %v854 = vpop.xlane.xlu0 %853
    %v855 = vsel %vm239, %v539, -inf
    %856 = vmax.xlane.f32.xlu0 %v855
    %v857 = vpop.xlane.xlu0 %856
    %v858 = vsel %vm239, %v615, -inf
    %859 = vmax.xlane.f32.xlu0 %v858
    %v860 = vpop.xlane.xlu0 %859
    %v861 = vsel %vm239, %v691, -inf
    %862 = vmax.xlane.f32.xlu0 %v861
    %v863 = vpop.xlane.xlu0 %862
    %v864 = vsel %vm239, %v767, -inf
    %865 = vmax.xlane.f32.xlu0 %v864
    %v866 = vpop.xlane.xlu0 %865
    %v867 = vsel %vm239, %v843, -inf
    %868 = vmax.xlane.f32.xlu0 %v867
    %v869 = vpop.xlane.xlu0 %868
    %v870 = vsub.f32 %v311, %v848
    %v871 = vsub.f32 %v387, %v851
    %v872 = vsub.f32 %v463, %v854
    %v873 = vsub.f32 %v539, %v857
    %v874 = vsub.f32 %v615, %v860
    %v875 = vsub.f32 %v691, %v863
    %v876 = vsub.f32 %v767, %v866
    %v877 = vsub.f32 %v843, %v869
    %v878 = vmul.f32 %v870, 1.442695
    %v879 = vpow.pop %v878
    %v880 = vmul.f32 %v871, 1.442695
    %v881 = vpow.pop %v880
    %v882 = vmul.f32 %v872, 1.442695
    %v883 = vpow.pop %v882
    %v884 = vmul.f32 %v873, 1.442695
    %v885 = vpow.pop %v884
    %v886 = vmul.f32 %v874, 1.442695
    %v887 = vpow.pop %v886
    %v888 = vmul.f32 %v875, 1.442695
    %v889 = vpow.pop %v888
    %v890 = vmul.f32 %v876, 1.442695
    %v891 = vpow.pop %v890
    %v892 = vmul.f32 %v877, 1.442695
    %v893 = vpow.pop %v892
    %v894 = vsel %vm239, %v879, 0.0
    %895 = vadd.xlane.f32.xlu0 %v894
    %v896 = vpop.xlane.xlu0 %895
    %v897 = vsel %vm239, %v881, 0.0
    %898 = vadd.xlane.f32.xlu0 %v897
    %v899 = vpop.xlane.xlu0 %898
    %v900 = vsel %vm239, %v883, 0.0
    %901 = vadd.xlane.f32.xlu0 %v900
    %v902 = vpop.xlane.xlu0 %901
    %v903 = vsel %vm239, %v885, 0.0
    %904 = vadd.xlane.f32.xlu0 %v903
    %v905 = vpop.xlane.xlu0 %904
    %v906 = vsel %vm239, %v887, 0.0
    %907 = vadd.xlane.f32.xlu0 %v906
    %v908 = vpop.xlane.xlu0 %907
    %v909 = vsel %vm239, %v889, 0.0
    %910 = vadd.xlane.f32.xlu0 %v909
    %v911 = vpop.xlane.xlu0 %910
    %v912 = vsel %vm239, %v891, 0.0
    %913 = vadd.xlane.f32.xlu0 %v912
    %v914 = vpop.xlane.xlu0 %913
    %v915 = vsel %vm239, %v893, 0.0
    %916 = vadd.xlane.f32.xlu0 %v915
    %v917 = vpop.xlane.xlu0 %916
    %v918 = vrcp.pop %v896
    %v919 = vrcp.pop %v899
    %v920 = vrcp.pop %v902
    %v921 = vrcp.pop %v905
    %v922 = vrcp.pop %v908
    %v923 = vrcp.pop %v911
    %v924 = vrcp.pop %v914
    %v925 = vrcp.pop %v917
    %v926 = vmul.f32 %v896, %v918
    %v927 = vmul.f32 %v899, %v919
    %v928 = vmul.f32 %v902, %v920
    %v929 = vmul.f32 %v905, %v921
    %v930 = vmul.f32 %v908, %v922
    %v931 = vmul.f32 %v911, %v923
    %v932 = vmul.f32 %v914, %v924
    %v933 = vmul.f32 %v917, %v925
    %v934 = vsub.f32 2.0, %v926
    %v935 = vsub.f32 2.0, %v927
    %v936 = vsub.f32 2.0, %v928
    %v937 = vsub.f32 2.0, %v929
    %v938 = vsub.f32 2.0, %v930
    %v939 = vsub.f32 2.0, %v931
    %v940 = vsub.f32 2.0, %v932
    %v941 = vsub.f32 2.0, %v933
    %v942 = vmul.f32 %v918, %v934
    %v943 = vmul.f32 %v919, %v935
    %v944 = vmul.f32 %v920, %v936
    %v945 = vmul.f32 %v921, %v937
    %v946 = vmul.f32 %v922, %v938
    %v947 = vmul.f32 %v923, %v939
    %v948 = vmul.f32 %v924, %v940
    %v949 = vmul.f32 %v925, %v941
    %v950 = vmul.f32 %v879, %v942
    %v951 = vmul.f32 %v881, %v943
    %v952 = vmul.f32 %v883, %v944
    %v953 = vmul.f32 %v885, %v945
    %v954 = vmul.f32 %v887, %v946
    %v955 = vmul.f32 %v889, %v947
    %v956 = vmul.f32 %v891, %v948
    %v957 = vmul.f32 %v893, %v949
    %958 = vrot.lane.b32.xlu0 %v207, 64
    %v959 = vpop.permute.xlu0 %958
    %v962 = vsel %vm239, %v950, 0
    %964 = vmatprep.subr.mxu0 0.0
    %965 = vmatpush1.msra.mxu0 %v959
    %966 = vmatprep.subr.mxu0 0.0
    %967 = vmatpush1.msra.mxu0 0.0
    %968 = vmatprep.subr.mxu0 0.0
    %969 = vmatpush1.msra.mxu0 0.0
    %970 = vmatprep.subr.mxu0 0.0
    %971 = vmatpush1.msra.mxu0 0.0
    %972 = vmatprep.subr.mxu0 0.0
    %973 = vmatpush1.msra.mxu0 0.0
    %974 = vmatprep.subr.mxu0 0.0
    %975 = vmatpush1.msra.mxu0 0.0
    %976 = vmatprep.subr.mxu0 0.0
    %977 = vmatpush1.msra.mxu0 0.0
    %978 = vmatprep.subr.mxu0 0.0
    %979 = vmatpush1.msra.mxu0 0.0
    %980 = vmatprep.subr.mxu0 0.0
    %981 = vmatpush1.msra.mxu0 0.0
    %982 = vmatprep.subr.mxu0 0.0
    %983 = vmatpush1.msra.mxu0 0.0
    %984 = vmatprep.subr.mxu0 0.0
    %985 = vmatpush1.msra.mxu0 0.0
    %986 = vmatprep.subr.mxu0 0.0
    %987 = vmatpush1.msra.mxu0 0.0
    %988 = vmatprep.subr.mxu0 0.0
    %989 = vmatpush1.msra.mxu0 0.0
    %990 = vmatprep.subr.mxu0 0.0
    %991 = vmatpush1.msra.mxu0 0.0
    %992 = vmatprep.subr.mxu0 0.0
    %993 = vmatpush1.msra.mxu0 0.0
    %994 = vmatprep.subr.mxu0 0.0
    %995 = vmatpush1.msra.mxu0 0.0
    %996 = vmatprep.subr.mxu0 0.0
    %997 = vmatpush1.msra.mxu0 0.0
    %998 = vmatprep.subr.mxu0 0.0
    %999 = vmatpush1.msra.mxu0 0.0
    %1000 = vmatprep.subr.mxu0 0.0
    %1001 = vmatpush1.msra.mxu0 0.0
    %1002 = vmatprep.subr.mxu0 0.0
    %1003 = vmatpush1.msra.mxu0 0.0
    %1004 = vmatprep.subr.mxu0 0.0
    %1005 = vmatpush1.msra.mxu0 0.0
    %1006 = vmatprep.subr.mxu0 0.0
    %1007 = vmatpush1.msra.mxu0 0.0
    %1008 = vmatprep.subr.mxu0 0.0
    %1009 = vmatpush1.msra.mxu0 0.0
    %1010 = vmatprep.subr.mxu0 0.0
    %1011 = vmatpush1.msra.mxu0 0.0
    %1012 = vmatprep.subr.mxu0 0.0
    %1013 = vmatpush1.msra.mxu0 0.0
    %1014 = vmatprep.subr.mxu0 0.0
    %1015 = vmatpush1.msra.mxu0 0.0
    %1016 = vmatprep.subr.mxu0 0.0
    %1017 = vmatpush1.msra.mxu0 0.0
    %1018 = vmatprep.subr.mxu0 0.0
    %1019 = vmatpush1.msra.mxu0 0.0
    %1020 = vmatprep.subr.mxu0 0.0
    %1021 = vmatpush1.msra.mxu0 0.0
    %1022 = vmatprep.subr.mxu0 0.0
    %1023 = vmatpush1.msra.mxu0 0.0
    %1024 = vmatprep.subr.mxu0 0.0
    %1025 = vmatpush1.msra.mxu0 0.0
    %1026 = vmatprep.subr.mxu0 0.0
    %1027 = vmatpush1.msra.mxu0 0.0
    %1028 = vmatprep.mubr.f32.mxu0 0.0
    %1029 = vmatmul.mubr.f32.gmra.mrb[0].mxu0 %v962
    %v1030 = vpop.f32.mrb[0].mxu0
    %v1031 = vadd.f32 0.0, %v1030
    %v1032 = vpop.f32.mrb[0].mxu0
    %1033 = vdwg.mxu0
    %1034 = vrot.lane.b32.xlu0 %v212, 64
    %v1035 = vpop.permute.xlu0 %1034
    %v1038 = vsel %vm239, %v951, 0
    %1040 = vmatprep.subr.mxu0 0.0
    %1041 = vmatpush1.msra.mxu0 %v1035
    %1042 = vmatprep.subr.mxu0 0.0
    %1043 = vmatpush1.msra.mxu0 0.0
    %1044 = vmatprep.subr.mxu0 0.0
    %1045 = vmatpush1.msra.mxu0 0.0
    %1046 = vmatprep.subr.mxu0 0.0
    %1047 = vmatpush1.msra.mxu0 0.0
    %1048 = vmatprep.subr.mxu0 0.0
    %1049 = vmatpush1.msra.mxu0 0.0
    %1050 = vmatprep.subr.mxu0 0.0
    %1051 = vmatpush1.msra.mxu0 0.0
    %1052 = vmatprep.subr.mxu0 0.0
    %1053 = vmatpush1.msra.mxu0 0.0
    %1054 = vmatprep.subr.mxu0 0.0
    %1055 = vmatpush1.msra.mxu0 0.0
    %1056 = vmatprep.subr.mxu0 0.0
    %1057 = vmatpush1.msra.mxu0 0.0
    %1058 = vmatprep.subr.mxu0 0.0
    %1059 = vmatpush1.msra.mxu0 0.0
    %1060 = vmatprep.subr.mxu0 0.0
    %1061 = vmatpush1.msra.mxu0 0.0
    %1062 = vmatprep.subr.mxu0 0.0
    %1063 = vmatpush1.msra.mxu0 0.0
    %1064 = vmatprep.subr.mxu0 0.0
    %1065 = vmatpush1.msra.mxu0 0.0
    %1066 = vmatprep.subr.mxu0 0.0
    %1067 = vmatpush1.msra.mxu0 0.0
    %1068 = vmatprep.subr.mxu0 0.0
    %1069 = vmatpush1.msra.mxu0 0.0
    %1070 = vmatprep.subr.mxu0 0.0
    %1071 = vmatpush1.msra.mxu0 0.0
    %1072 = vmatprep.subr.mxu0 0.0
    %1073 = vmatpush1.msra.mxu0 0.0
    %1074 = vmatprep.subr.mxu0 0.0
    %1075 = vmatpush1.msra.mxu0 0.0
    %1076 = vmatprep.subr.mxu0 0.0
    %1077 = vmatpush1.msra.mxu0 0.0
    %1078 = vmatprep.subr.mxu0 0.0
    %1079 = vmatpush1.msra.mxu0 0.0
    %1080 = vmatprep.subr.mxu0 0.0
    %1081 = vmatpush1.msra.mxu0 0.0
    %1082 = vmatprep.subr.mxu0 0.0
    %1083 = vmatpush1.msra.mxu0 0.0
    %1084 = vmatprep.subr.mxu0 0.0
    %1085 = vmatpush1.msra.mxu0 0.0
    %1086 = vmatprep.subr.mxu0 0.0
    %1087 = vmatpush1.msra.mxu0 0.0
    %1088 = vmatprep.subr.mxu0 0.0
    %1089 = vmatpush1.msra.mxu0 0.0
    %1090 = vmatprep.subr.mxu0 0.0
    %1091 = vmatpush1.msra.mxu0 0.0
    %1092 = vmatprep.subr.mxu0 0.0
    %1093 = vmatpush1.msra.mxu0 0.0
    %1094 = vmatprep.subr.mxu0 0.0
    %1095 = vmatpush1.msra.mxu0 0.0
    %1096 = vmatprep.subr.mxu0 0.0
    %1097 = vmatpush1.msra.mxu0 0.0
    %1098 = vmatprep.subr.mxu0 0.0
    %1099 = vmatpush1.msra.mxu0 0.0
    %1100 = vmatprep.subr.mxu0 0.0
    %1101 = vmatpush1.msra.mxu0 0.0
    %1102 = vmatprep.subr.mxu0 0.0
    %1103 = vmatpush1.msra.mxu0 0.0
    %1104 = vmatprep.mubr.f32.mxu0 0.0
    %1105 = vmatmul.mubr.f32.gmra.mrb[0].mxu0 %v1038
    %v1106 = vpop.f32.mrb[0].mxu0
    %v1107 = vadd.f32 0.0, %v1106
    %v1108 = vpop.f32.mrb[0].mxu0
    %1109 = vdwg.mxu0
    %1110 = vrot.lane.b32.xlu0 %v218, 64
    %v1111 = vpop.permute.xlu0 %1110
    %v1114 = vsel %vm239, %v952, 0
    %1116 = vmatprep.subr.mxu0 0.0
    %1117 = vmatpush1.msra.mxu0 %v1111
    %1118 = vmatprep.subr.mxu0 0.0
    %1119 = vmatpush1.msra.mxu0 0.0
    %1120 = vmatprep.subr.mxu0 0.0
    %1121 = vmatpush1.msra.mxu0 0.0
    %1122 = vmatprep.subr.mxu0 0.0
    %1123 = vmatpush1.msra.mxu0 0.0
    %1124 = vmatprep.subr.mxu0 0.0
    %1125 = vmatpush1.msra.mxu0 0.0
    %1126 = vmatprep.subr.mxu0 0.0
    %1127 = vmatpush1.msra.mxu0 0.0
    %1128 = vmatprep.subr.mxu0 0.0
    %1129 = vmatpush1.msra.mxu0 0.0
    %1130 = vmatprep.subr.mxu0 0.0
    %1131 = vmatpush1.msra.mxu0 0.0
    %1132 = vmatprep.subr.mxu0 0.0
    %1133 = vmatpush1.msra.mxu0 0.0
    %1134 = vmatprep.subr.mxu0 0.0
    %1135 = vmatpush1.msra.mxu0 0.0
    %1136 = vmatprep.subr.mxu0 0.0
    %1137 = vmatpush1.msra.mxu0 0.0
    %1138 = vmatprep.subr.mxu0 0.0
    %1139 = vmatpush1.msra.mxu0 0.0
    %1140 = vmatprep.subr.mxu0 0.0
    %1141 = vmatpush1.msra.mxu0 0.0
    %1142 = vmatprep.subr.mxu0 0.0
    %1143 = vmatpush1.msra.mxu0 0.0
    %1144 = vmatprep.subr.mxu0 0.0
    %1145 = vmatpush1.msra.mxu0 0.0
    %1146 = vmatprep.subr.mxu0 0.0
    %1147 = vmatpush1.msra.mxu0 0.0
    %1148 = vmatprep.subr.mxu0 0.0
    %1149 = vmatpush1.msra.mxu0 0.0
    %1150 = vmatprep.subr.mxu0 0.0
    %1151 = vmatpush1.msra.mxu0 0.0
    %1152 = vmatprep.subr.mxu0 0.0
    %1153 = vmatpush1.msra.mxu0 0.0
    %1154 = vmatprep.subr.mxu0 0.0
    %1155 = vmatpush1.msra.mxu0 0.0
    %1156 = vmatprep.subr.mxu0 0.0
    %1157 = vmatpush1.msra.mxu0 0.0
    %1158 = vmatprep.subr.mxu0 0.0
    %1159 = vmatpush1.msra.mxu0 0.0
    %1160 = vmatprep.subr.mxu0 0.0
    %1161 = vmatpush1.msra.mxu0 0.0
    %1162 = vmatprep.subr.mxu0 0.0
    %1163 = vmatpush1.msra.mxu0 0.0
    %1164 = vmatprep.subr.mxu0 0.0
    %1165 = vmatpush1.msra.mxu0 0.0
    %1166 = vmatprep.subr.mxu0 0.0
    %1167 = vmatpush1.msra.mxu0 0.0
    %1168 = vmatprep.subr.mxu0 0.0
    %1169 = vmatpush1.msra.mxu0 0.0
    %1170 = vmatprep.subr.mxu0 0.0
    %1171 = vmatpush1.msra.mxu0 0.0
    %1172 = vmatprep.subr.mxu0 0.0
    %1173 = vmatpush1.msra.mxu0 0.0
    %1174 = vmatprep.subr.mxu0 0.0
    %1175 = vmatpush1.msra.mxu0 0.0
    %1176 = vmatprep.subr.mxu0 0.0
    %1177 = vmatpush1.msra.mxu0 0.0
    %1178 = vmatprep.subr.mxu0 0.0
    %1179 = vmatpush1.msra.mxu0 0.0
    %1180 = vmatprep.mubr.f32.mxu0 0.0
    %1181 = vmatmul.mubr.f32.gmra.mrb[0].mxu0 %v1114
    %v1182 = vpop.f32.mrb[0].mxu0
    %v1183 = vadd.f32 0.0, %v1182
    %v1184 = vpop.f32.mrb[0].mxu0
    %1185 = vdwg.mxu0
    %1186 = vrot.lane.b32.xlu0 %v220, 64
    %v1187 = vpop.permute.xlu0 %1186
    %v1190 = vsel %vm239, %v953, 0
    %1192 = vmatprep.subr.mxu0 0.0
    %1193 = vmatpush1.msra.mxu0 %v1187
    %1194 = vmatprep.subr.mxu0 0.0
    %1195 = vmatpush1.msra.mxu0 0.0
    %1196 = vmatprep.subr.mxu0 0.0
    %1197 = vmatpush1.msra.mxu0 0.0
    %1198 = vmatprep.subr.mxu0 0.0
    %1199 = vmatpush1.msra.mxu0 0.0
    %1200 = vmatprep.subr.mxu0 0.0
    %1201 = vmatpush1.msra.mxu0 0.0
    %1202 = vmatprep.subr.mxu0 0.0
    %1203 = vmatpush1.msra.mxu0 0.0
    %1204 = vmatprep.subr.mxu0 0.0
    %1205 = vmatpush1.msra.mxu0 0.0
    %1206 = vmatprep.subr.mxu0 0.0
    %1207 = vmatpush1.msra.mxu0 0.0
    %1208 = vmatprep.subr.mxu0 0.0
    %1209 = vmatpush1.msra.mxu0 0.0
    %1210 = vmatprep.subr.mxu0 0.0
    %1211 = vmatpush1.msra.mxu0 0.0
    %1212 = vmatprep.subr.mxu0 0.0
    %1213 = vmatpush1.msra.mxu0 0.0
    %1214 = vmatprep.subr.mxu0 0.0
    %1215 = vmatpush1.msra.mxu0 0.0
    %1216 = vmatprep.subr.mxu0 0.0
    %1217 = vmatpush1.msra.mxu0 0.0
    %1218 = vmatprep.subr.mxu0 0.0
    %1219 = vmatpush1.msra.mxu0 0.0
    %1220 = vmatprep.subr.mxu0 0.0
    %1221 = vmatpush1.msra.mxu0 0.0
    %1222 = vmatprep.subr.mxu0 0.0
    %1223 = vmatpush1.msra.mxu0 0.0
    %1224 = vmatprep.subr.mxu0 0.0
    %1225 = vmatpush1.msra.mxu0 0.0
    %1226 = vmatprep.subr.mxu0 0.0
    %1227 = vmatpush1.msra.mxu0 0.0
    %1228 = vmatprep.subr.mxu0 0.0
    %1229 = vmatpush1.msra.mxu0 0.0
    %1230 = vmatprep.subr.mxu0 0.0
    %1231 = vmatpush1.msra.mxu0 0.0
    %1232 = vmatprep.subr.mxu0 0.0
    %1233 = vmatpush1.msra.mxu0 0.0
    %1234 = vmatprep.subr.mxu0 0.0
    %1235 = vmatpush1.msra.mxu0 0.0
    %1236 = vmatprep.subr.mxu0 0.0
    %1237 = vmatpush1.msra.mxu0 0.0
    %1238 = vmatprep.subr.mxu0 0.0
    %1239 = vmatpush1.msra.mxu0 0.0
    %1240 = vmatprep.subr.mxu0 0.0
    %1241 = vmatpush1.msra.mxu0 0.0
    %1242 = vmatprep.subr.mxu0 0.0
    %1243 = vmatpush1.msra.mxu0 0.0
    %1244 = vmatprep.subr.mxu0 0.0
    %1245 = vmatpush1.msra.mxu0 0.0
    %1246 = vmatprep.subr.mxu0 0.0
    %1247 = vmatpush1.msra.mxu0 0.0
    %1248 = vmatprep.subr.mxu0 0.0
    %1249 = vmatpush1.msra.mxu0 0.0
    %1250 = vmatprep.subr.mxu0 0.0
    %1251 = vmatpush1.msra.mxu0 0.0
    %1252 = vmatprep.subr.mxu0 0.0
    %1253 = vmatpush1.msra.mxu0 0.0
    %1254 = vmatprep.subr.mxu0 0.0
    %1255 = vmatpush1.msra.mxu0 0.0
    %1256 = vmatprep.mubr.f32.mxu0 0.0
    %1257 = vmatmul.mubr.f32.gmra.mrb[0].mxu0 %v1190
    %v1258 = vpop.f32.mrb[0].mxu0
    %v1259 = vadd.f32 0.0, %v1258
    %v1260 = vpop.f32.mrb[0].mxu0
    %1261 = vdwg.mxu0
    %1262 = vrot.lane.b32.xlu0 %v222, 64
    %v1263 = vpop.permute.xlu0 %1262
    %v1266 = vsel %vm239, %v954, 0
    %1268 = vmatprep.subr.mxu0 0.0
    %1269 = vmatpush1.msra.mxu0 %v1263
    %1270 = vmatprep.subr.mxu0 0.0
    %1271 = vmatpush1.msra.mxu0 0.0
    %1272 = vmatprep.subr.mxu0 0.0
    %1273 = vmatpush1.msra.mxu0 0.0
    %1274 = vmatprep.subr.mxu0 0.0
    %1275 = vmatpush1.msra.mxu0 0.0
    %1276 = vmatprep.subr.mxu0 0.0
    %1277 = vmatpush1.msra.mxu0 0.0
    %1278 = vmatprep.subr.mxu0 0.0
    %1279 = vmatpush1.msra.mxu0 0.0
    %1280 = vmatprep.subr.mxu0 0.0
    %1281 = vmatpush1.msra.mxu0 0.0
    %1282 = vmatprep.subr.mxu0 0.0
    %1283 = vmatpush1.msra.mxu0 0.0
    %1284 = vmatprep.subr.mxu0 0.0
    %1285 = vmatpush1.msra.mxu0 0.0
    %1286 = vmatprep.subr.mxu0 0.0
    %1287 = vmatpush1.msra.mxu0 0.0
    %1288 = vmatprep.subr.mxu0 0.0
    %1289 = vmatpush1.msra.mxu0 0.0
    %1290 = vmatprep.subr.mxu0 0.0
    %1291 = vmatpush1.msra.mxu0 0.0
    %1292 = vmatprep.subr.mxu0 0.0
    %1293 = vmatpush1.msra.mxu0 0.0
    %1294 = vmatprep.subr.mxu0 0.0
    %1295 = vmatpush1.msra.mxu0 0.0
    %1296 = vmatprep.subr.mxu0 0.0
    %1297 = vmatpush1.msra.mxu0 0.0
    %1298 = vmatprep.subr.mxu0 0.0
    %1299 = vmatpush1.msra.mxu0 0.0
    %1300 = vmatprep.subr.mxu0 0.0
    %1301 = vmatpush1.msra.mxu0 0.0
    %1302 = vmatprep.subr.mxu0 0.0
    %1303 = vmatpush1.msra.mxu0 0.0
    %1304 = vmatprep.subr.mxu0 0.0
    %1305 = vmatpush1.msra.mxu0 0.0
    %1306 = vmatprep.subr.mxu0 0.0
    %1307 = vmatpush1.msra.mxu0 0.0
    %1308 = vmatprep.subr.mxu0 0.0
    %1309 = vmatpush1.msra.mxu0 0.0
    %1310 = vmatprep.subr.mxu0 0.0
    %1311 = vmatpush1.msra.mxu0 0.0
    %1312 = vmatprep.subr.mxu0 0.0
    %1313 = vmatpush1.msra.mxu0 0.0
    %1314 = vmatprep.subr.mxu0 0.0
    %1315 = vmatpush1.msra.mxu0 0.0
    %1316 = vmatprep.subr.mxu0 0.0
    %1317 = vmatpush1.msra.mxu0 0.0
    %1318 = vmatprep.subr.mxu0 0.0
    %1319 = vmatpush1.msra.mxu0 0.0
    %1320 = vmatprep.subr.mxu0 0.0
    %1321 = vmatpush1.msra.mxu0 0.0
    %1322 = vmatprep.subr.mxu0 0.0
    %1323 = vmatpush1.msra.mxu0 0.0
    %1324 = vmatprep.subr.mxu0 0.0
    %1325 = vmatpush1.msra.mxu0 0.0
    %1326 = vmatprep.subr.mxu0 0.0
    %1327 = vmatpush1.msra.mxu0 0.0
    %1328 = vmatprep.subr.mxu0 0.0
    %1329 = vmatpush1.msra.mxu0 0.0
    %1330 = vmatprep.subr.mxu0 0.0
    %1331 = vmatpush1.msra.mxu0 0.0
    %1332 = vmatprep.mubr.f32.mxu0 0.0
    %1333 = vmatmul.mubr.f32.gmra.mrb[0].mxu0 %v1266
    %v1334 = vpop.f32.mrb[0].mxu0
    %v1335 = vadd.f32 0.0, %v1334
    %v1336 = vpop.f32.mrb[0].mxu0
    %1337 = vdwg.mxu0
    %1338 = vrot.lane.b32.xlu0 %v224, 64
    %v1339 = vpop.permute.xlu0 %1338
    %v1342 = vsel %vm239, %v955, 0
    %1344 = vmatprep.subr.mxu0 0.0
    %1345 = vmatpush1.msra.mxu0 %v1339
    %1346 = vmatprep.subr.mxu0 0.0
    %1347 = vmatpush1.msra.mxu0 0.0
    %1348 = vmatprep.subr.mxu0 0.0
    %1349 = vmatpush1.msra.mxu0 0.0
    %1350 = vmatprep.subr.mxu0 0.0
    %1351 = vmatpush1.msra.mxu0 0.0
    %1352 = vmatprep.subr.mxu0 0.0
    %1353 = vmatpush1.msra.mxu0 0.0
    %1354 = vmatprep.subr.mxu0 0.0
    %1355 = vmatpush1.msra.mxu0 0.0
    %1356 = vmatprep.subr.mxu0 0.0
    %1357 = vmatpush1.msra.mxu0 0.0
    %1358 = vmatprep.subr.mxu0 0.0
    %1359 = vmatpush1.msra.mxu0 0.0
    %1360 = vmatprep.subr.mxu0 0.0
    %1361 = vmatpush1.msra.mxu0 0.0
    %1362 = vmatprep.subr.mxu0 0.0
    %1363 = vmatpush1.msra.mxu0 0.0
    %1364 = vmatprep.subr.mxu0 0.0
    %1365 = vmatpush1.msra.mxu0 0.0
    %1366 = vmatprep.subr.mxu0 0.0
    %1367 = vmatpush1.msra.mxu0 0.0
    %1368 = vmatprep.subr.mxu0 0.0
    %1369 = vmatpush1.msra.mxu0 0.0
    %1370 = vmatprep.subr.mxu0 0.0
    %1371 = vmatpush1.msra.mxu0 0.0
    %1372 = vmatprep.subr.mxu0 0.0
    %1373 = vmatpush1.msra.mxu0 0.0
    %1374 = vmatprep.subr.mxu0 0.0
    %1375 = vmatpush1.msra.mxu0 0.0
    %1376 = vmatprep.subr.mxu0 0.0
    %1377 = vmatpush1.msra.mxu0 0.0
    %1378 = vmatprep.subr.mxu0 0.0
    %1379 = vmatpush1.msra.mxu0 0.0
    %1380 = vmatprep.subr.mxu0 0.0
    %1381 = vmatpush1.msra.mxu0 0.0
    %1382 = vmatprep.subr.mxu0 0.0
    %1383 = vmatpush1.msra.mxu0 0.0
    %1384 = vmatprep.subr.mxu0 0.0
    %1385 = vmatpush1.msra.mxu0 0.0
    %1386 = vmatprep.subr.mxu0 0.0
    %1387 = vmatpush1.msra.mxu0 0.0
    %1388 = vmatprep.subr.mxu0 0.0
    %1389 = vmatpush1.msra.mxu0 0.0
    %1390 = vmatprep.subr.mxu0 0.0
    %1391 = vmatpush1.msra.mxu0 0.0
    %1392 = vmatprep.subr.mxu0 0.0
    %1393 = vmatpush1.msra.mxu0 0.0
    %1394 = vmatprep.subr.mxu0 0.0
    %1395 = vmatpush1.msra.mxu0 0.0
    %1396 = vmatprep.subr.mxu0 0.0
    %1397 = vmatpush1.msra.mxu0 0.0
    %1398 = vmatprep.subr.mxu0 0.0
    %1399 = vmatpush1.msra.mxu0 0.0
    %1400 = vmatprep.subr.mxu0 0.0
    %1401 = vmatpush1.msra.mxu0 0.0
    %1402 = vmatprep.subr.mxu0 0.0
    %1403 = vmatpush1.msra.mxu0 0.0
    %1404 = vmatprep.subr.mxu0 0.0
    %1405 = vmatpush1.msra.mxu0 0.0
    %1406 = vmatprep.subr.mxu0 0.0
    %1407 = vmatpush1.msra.mxu0 0.0
    %1408 = vmatprep.mubr.f32.mxu0 0.0
    %1409 = vmatmul.mubr.f32.gmra.mrb[0].mxu0 %v1342
    %v1410 = vpop.f32.mrb[0].mxu0
    %v1411 = vadd.f32 0.0, %v1410
    %v1412 = vpop.f32.mrb[0].mxu0
    %1413 = vdwg.mxu0
    %1414 = vrot.lane.b32.xlu0 %v226, 64
    %v1415 = vpop.permute.xlu0 %1414
    %v1418 = vsel %vm239, %v956, 0
    %1420 = vmatprep.subr.mxu0 0.0
    %1421 = vmatpush1.msra.mxu0 %v1415
    %1422 = vmatprep.subr.mxu0 0.0
    %1423 = vmatpush1.msra.mxu0 0.0
    %1424 = vmatprep.subr.mxu0 0.0
    %1425 = vmatpush1.msra.mxu0 0.0
    %1426 = vmatprep.subr.mxu0 0.0
    %1427 = vmatpush1.msra.mxu0 0.0
    %1428 = vmatprep.subr.mxu0 0.0
    %1429 = vmatpush1.msra.mxu0 0.0
    %1430 = vmatprep.subr.mxu0 0.0
    %1431 = vmatpush1.msra.mxu0 0.0
    %1432 = vmatprep.subr.mxu0 0.0
    %1433 = vmatpush1.msra.mxu0 0.0
    %1434 = vmatprep.subr.mxu0 0.0
    %1435 = vmatpush1.msra.mxu0 0.0
    %1436 = vmatprep.subr.mxu0 0.0
    %1437 = vmatpush1.msra.mxu0 0.0
    %1438 = vmatprep.subr.mxu0 0.0
    %1439 = vmatpush1.msra.mxu0 0.0
    %1440 = vmatprep.subr.mxu0 0.0
    %1441 = vmatpush1.msra.mxu0 0.0
    %1442 = vmatprep.subr.mxu0 0.0
    %1443 = vmatpush1.msra.mxu0 0.0
    %1444 = vmatprep.subr.mxu0 0.0
    %1445 = vmatpush1.msra.mxu0 0.0
    %1446 = vmatprep.subr.mxu0 0.0
    %1447 = vmatpush1.msra.mxu0 0.0
    %1448 = vmatprep.subr.mxu0 0.0
    %1449 = vmatpush1.msra.mxu0 0.0
    %1450 = vmatprep.subr.mxu0 0.0
    %1451 = vmatpush1.msra.mxu0 0.0
    %1452 = vmatprep.subr.mxu0 0.0
    %1453 = vmatpush1.msra.mxu0 0.0
    %1454 = vmatprep.subr.mxu0 0.0
    %1455 = vmatpush1.msra.mxu0 0.0
    %1456 = vmatprep.subr.mxu0 0.0
    %1457 = vmatpush1.msra.mxu0 0.0
    %1458 = vmatprep.subr.mxu0 0.0
    %1459 = vmatpush1.msra.mxu0 0.0
    %1460 = vmatprep.subr.mxu0 0.0
    %1461 = vmatpush1.msra.mxu0 0.0
    %1462 = vmatprep.subr.mxu0 0.0
    %1463 = vmatpush1.msra.mxu0 0.0
    %1464 = vmatprep.subr.mxu0 0.0
    %1465 = vmatpush1.msra.mxu0 0.0
    %1466 = vmatprep.subr.mxu0 0.0
    %1467 = vmatpush1.msra.mxu0 0.0
    %1468 = vmatprep.subr.mxu0 0.0
    %1469 = vmatpush1.msra.mxu0 0.0
    %1470 = vmatprep.subr.mxu0 0.0
    %1471 = vmatpush1.msra.mxu0 0.0
    %1472 = vmatprep.subr.mxu0 0.0
    %1473 = vmatpush1.msra.mxu0 0.0
    %1474 = vmatprep.subr.mxu0 0.0
    %1475 = vmatpush1.msra.mxu0 0.0
    %1476 = vmatprep.subr.mxu0 0.0
    %1477 = vmatpush1.msra.mxu0 0.0
    %1478 = vmatprep.subr.mxu0 0.0
    %1479 = vmatpush1.msra.mxu0 0.0
    %1480 = vmatprep.subr.mxu0 0.0
    %1481 = vmatpush1.msra.mxu0 0.0
    %1482 = vmatprep.subr.mxu0 0.0
    %1483 = vmatpush1.msra.mxu0 0.0
    %1484 = vmatprep.mubr.f32.mxu0 0.0
    %1485 = vmatmul.mubr.f32.gmra.mrb[0].mxu0 %v1418
    %v1486 = vpop.f32.mrb[0].mxu0
    %v1487 = vadd.f32 0.0, %v1486
    %v1488 = vpop.f32.mrb[0].mxu0
    %1489 = vdwg.mxu0
    %1490 = vrot.lane.b32.xlu0 %v228, 64
    %v1491 = vpop.permute.xlu0 %1490
    %v1494 = vsel %vm239, %v957, 0
    %1496 = vmatprep.subr.mxu0 0.0
    %1497 = vmatpush1.msra.mxu0 %v1491
    %1498 = vmatprep.subr.mxu0 0.0
    %1499 = vmatpush1.msra.mxu0 0.0
    %1500 = vmatprep.subr.mxu0 0.0
    %1501 = vmatpush1.msra.mxu0 0.0
    %1502 = vmatprep.subr.mxu0 0.0
    %1503 = vmatpush1.msra.mxu0 0.0
    %1504 = vmatprep.subr.mxu0 0.0
    %1505 = vmatpush1.msra.mxu0 0.0
    %1506 = vmatprep.subr.mxu0 0.0
    %1507 = vmatpush1.msra.mxu0 0.0
    %1508 = vmatprep.subr.mxu0 0.0
    %1509 = vmatpush1.msra.mxu0 0.0
    %1510 = vmatprep.subr.mxu0 0.0
    %1511 = vmatpush1.msra.mxu0 0.0
    %1512 = vmatprep.subr.mxu0 0.0
    %1513 = vmatpush1.msra.mxu0 0.0
    %1514 = vmatprep.subr.mxu0 0.0
    %1515 = vmatpush1.msra.mxu0 0.0
    %1516 = vmatprep.subr.mxu0 0.0
    %1517 = vmatpush1.msra.mxu0 0.0
    %1518 = vmatprep.subr.mxu0 0.0
    %1519 = vmatpush1.msra.mxu0 0.0
    %1520 = vmatprep.subr.mxu0 0.0
    %1521 = vmatpush1.msra.mxu0 0.0
    %1522 = vmatprep.subr.mxu0 0.0
    %1523 = vmatpush1.msra.mxu0 0.0
    %1524 = vmatprep.subr.mxu0 0.0
    %1525 = vmatpush1.msra.mxu0 0.0
    %1526 = vmatprep.subr.mxu0 0.0
    %1527 = vmatpush1.msra.mxu0 0.0
    %1528 = vmatprep.subr.mxu0 0.0
    %1529 = vmatpush1.msra.mxu0 0.0
    %1530 = vmatprep.subr.mxu0 0.0
    %1531 = vmatpush1.msra.mxu0 0.0
    %1532 = vmatprep.subr.mxu0 0.0
    %1533 = vmatpush1.msra.mxu0 0.0
    %1534 = vmatprep.subr.mxu0 0.0
    %1535 = vmatpush1.msra.mxu0 0.0
    %1536 = vmatprep.subr.mxu0 0.0
    %1537 = vmatpush1.msra.mxu0 0.0
    %1538 = vmatprep.subr.mxu0 0.0
    %1539 = vmatpush1.msra.mxu0 0.0
    %1540 = vmatprep.subr.mxu0 0.0
    %1541 = vmatpush1.msra.mxu0 0.0
    %1542 = vmatprep.subr.mxu0 0.0
    %1543 = vmatpush1.msra.mxu0 0.0
    %1544 = vmatprep.subr.mxu0 0.0
    %1545 = vmatpush1.msra.mxu0 0.0
    %1546 = vmatprep.subr.mxu0 0.0
    %1547 = vmatpush1.msra.mxu0 0.0
    %1548 = vmatprep.subr.mxu0 0.0
    %1549 = vmatpush1.msra.mxu0 0.0
    %1550 = vmatprep.subr.mxu0 0.0
    %1551 = vmatpush1.msra.mxu0 0.0
    %1552 = vmatprep.subr.mxu0 0.0
    %1553 = vmatpush1.msra.mxu0 0.0
    %1554 = vmatprep.subr.mxu0 0.0
    %1555 = vmatpush1.msra.mxu0 0.0
    %1556 = vmatprep.subr.mxu0 0.0
    %1557 = vmatpush1.msra.mxu0 0.0
    %1558 = vmatprep.subr.mxu0 0.0
    %1559 = vmatpush1.msra.mxu0 0.0
    %1560 = vmatprep.mubr.f32.mxu0 0.0
    %1561 = vmatmul.mubr.f32.gmra.mrb[0].mxu0 %v1494
    %v1562 = vpop.f32.mrb[0].mxu0
    %v1563 = vadd.f32 0.0, %v1562
    %v1564 = vpop.f32.mrb[0].mxu0
    %1565 = vdwg.mxu0
    %1568 = vrot.lane.b32.xlu0 %v1183, 8
    %v1569 = vpop.permute.xlu0 %1568
    %1570 = vrot.lane.b32.xlu0 %v1259, 8
    %v1571 = vpop.permute.xlu0 %1570
    %1576 = vrot.lane.b32.xlu0 %v1335, 16
    %v1577 = vpop.permute.xlu0 %1576
    %1578 = vrot.lane.b32.xlu0 %v1411, 16
    %v1579 = vpop.permute.xlu0 %1578
    %1584 = vrot.lane.b32.xlu0 %v1487, 24
    %v1585 = vpop.permute.xlu0 %1584
    %1586 = vrot.lane.b32.xlu0 %v1563, 24
    %v1587 = vpop.permute.xlu0 %1586
    %v1590 = vsel %vm239, %v1031, %v1569
    %v1591 = vsel %vm239, %v1107, %v1571
    %vm1592 = vcmask 130048
    %v1593 = vsel %vm1592, %v1590, %v1577
    %v1594 = vsel %vm1592, %v1591, %v1579
    %vm1595 = vcmask 195584
    %v1596 = vsel %vm1595, %v1593, %v1585
    %v1597 = vsel %vm1595, %v1594, %v1587
    %v1598 = vlaneseq
    %v1599 = vshrl.u32 %v1598, 7
    %v1600 = vsub.s32 2, %v1599
    %v1601 = vrot.slane %v72, %v1600
    %v1603 = vsel %vm75, %v1596, 0
    %v1606 = vsel %vm75, %v1597, 0
    %1608 = vmatprep.subr.mxu0 0.0
    %1609 = vmatpush1.msra.mxu0 %v60
    %1610 = vmatprep.subr.mxu0 0.0
    %1611 = vmatpush1.msra.mxu0 %v61
    %1612 = vmatprep.subr.mxu0 0.0
    %1613 = vmatpush1.msra.mxu0 %v62
    %1614 = vmatprep.subr.mxu0 0.0
    %1615 = vmatpush1.msra.mxu0 %v63
    %1616 = vmatprep.subr.mxu0 0.0
    %1617 = vmatpush1.msra.mxu0 0.0
    %1618 = vmatprep.subr.mxu0 0.0
    %1619 = vmatpush1.msra.mxu0 0.0
    %1620 = vmatprep.subr.mxu0 0.0
    %1621 = vmatpush1.msra.mxu0 0.0
    %1622 = vmatprep.subr.mxu0 0.0
    %1623 = vmatpush1.msra.mxu0 0.0
    %1624 = vmatprep.subr.mxu0 0.0
    %1625 = vmatpush1.msra.mxu0 0.0
    %1626 = vmatprep.subr.mxu0 0.0
    %1627 = vmatpush1.msra.mxu0 0.0
    %1628 = vmatprep.subr.mxu0 0.0
    %1629 = vmatpush1.msra.mxu0 0.0
    %1630 = vmatprep.subr.mxu0 0.0
    %1631 = vmatpush1.msra.mxu0 0.0
    %1632 = vmatprep.subr.mxu0 0.0
    %1633 = vmatpush1.msra.mxu0 0.0
    %1634 = vmatprep.subr.mxu0 0.0
    %1635 = vmatpush1.msra.mxu0 0.0
    %1636 = vmatprep.subr.mxu0 0.0
    %1637 = vmatpush1.msra.mxu0 0.0
    %1638 = vmatprep.subr.mxu0 0.0
    %1639 = vmatpush1.msra.mxu0 0.0
    %1640 = vmatprep.subr.mxu0 0.0
    %1641 = vmatpush1.msra.mxu0 0.0
    %1642 = vmatprep.subr.mxu0 0.0
    %1643 = vmatpush1.msra.mxu0 0.0
    %1644 = vmatprep.subr.mxu0 0.0
    %1645 = vmatpush1.msra.mxu0 0.0
    %1646 = vmatprep.subr.mxu0 0.0
    %1647 = vmatpush1.msra.mxu0 0.0
    %1648 = vmatprep.subr.mxu0 0.0
    %1649 = vmatpush1.msra.mxu0 0.0
    %1650 = vmatprep.subr.mxu0 0.0
    %1651 = vmatpush1.msra.mxu0 0.0
    %1652 = vmatprep.subr.mxu0 0.0
    %1653 = vmatpush1.msra.mxu0 0.0
    %1654 = vmatprep.subr.mxu0 0.0
    %1655 = vmatpush1.msra.mxu0 0.0
    %1656 = vmatprep.subr.mxu0 0.0
    %1657 = vmatpush1.msra.mxu0 0.0
    %1658 = vmatprep.subr.mxu0 0.0
    %1659 = vmatpush1.msra.mxu0 0.0
    %1660 = vmatprep.subr.mxu0 0.0
    %1661 = vmatpush1.msra.mxu0 0.0
    %1662 = vmatprep.subr.mxu0 0.0
    %1663 = vmatpush1.msra.mxu0 0.0
    %1664 = vmatprep.subr.mxu0 0.0
    %1665 = vmatpush1.msra.mxu0 0.0
    %1666 = vmatprep.subr.mxu0 0.0
    %1667 = vmatpush1.msra.mxu0 0.0
    %1668 = vmatprep.subr.mxu0 0.0
    %1669 = vmatpush1.msra.mxu0 0.0
    %1670 = vmatprep.subr.mxu0 0.0
    %1671 = vmatpush1.msra.mxu0 0.0
    %1672 = vmatprep.mubr.f32.mxu0 0.0
    %1673 = vmatmul.mubr.f32.gmra.mrb[0].mxu0 %v1603
    %v1674 = vpop.f32.mrb[0].mxu0
    %v1675 = vadd.f32 %v1601, %v1674
    %v1676 = vpop.f32.mrb[0].mxu0
    %1677 = vmatprep.mubr.f32.mxu0 0.0
    %1678 = vmatmul.mubr.f32.gmra.mrb[0].mxu0 %v1606
    %v1679 = vpop.f32.mrb[0].mxu0
    %v1680 = vadd.f32 %v1601, %v1679
    %v1681 = vpop.f32.mrb[0].mxu0
    %1682 = vdwg.mxu0
    %v1683 = vadd.f32 %v73, %v1675
    %v1684 = vadd.f32 %v74, %v1680
    %v1685 = vsel %vm75, %v1683, 0.0
    %1686 = vadd.xlane.f32.xlu0 %v1685
    %v1687 = vpop.xlane.xlu0 %1686
    %v1688 = vsel %vm75, %v1684, 0.0
    %1689 = vadd.xlane.f32.xlu0 %v1688
    %v1690 = vpop.xlane.xlu0 %1689
    %v1691 = vmul.f32 %v1687, %v82
    %v1692 = vmul.f32 %v1690, %v82
    %v1693 = vsub.f32 %v1683, %v1691
    %v1694 = vsub.f32 %v1684, %v1692
    %v1695 = vmul.f32 %v1693, %v1693
    %v1696 = vmul.f32 %v1694, %v1694
    %v1697 = vsel %vm75, %v1695, 0.0
    %1698 = vadd.xlane.f32.xlu0 %v1697
    %v1699 = vpop.xlane.xlu0 %1698
    %v1700 = vsel %vm75, %v1696, 0.0
    %1701 = vadd.xlane.f32.xlu0 %v1700
    %v1702 = vpop.xlane.xlu0 %1701
    %v1703 = vmul.f32 %v1699, %v95
    %v1704 = vmul.f32 %v1702, %v95
    %v1705 = vrsqrt.pop %v1703
    %v1706 = vmul.f32 %v1703, %v1705
    %vm1707 = vcmp.eq.f32.partialorder %v1703, inf
    %v1708 = vsel %vm1707, %v1703, %v1706
    %vm1709 = vcmp.eq.f32.partialorder %v1703, 0.0
    %v1710 = vand.u32 %v1703, 2147483648
    %v1711 = vsel %vm1709, %v1710, %v1708
    %v1712 = vrsqrt.pop %v1704
    %v1713 = vmul.f32 %v1704, %v1712
    %vm1714 = vcmp.eq.f32.partialorder %v1704, inf
    %v1715 = vsel %vm1714, %v1704, %v1713
    %vm1716 = vcmp.eq.f32.partialorder %v1704, 0.0
    %v1717 = vand.u32 %v1704, 2147483648
    %v1718 = vsel %vm1716, %v1717, %v1715
    %v1719 = vlaneseq
    %v1720 = vshrl.u32 %v1719, 7
    %v1721 = vsub.s32 6, %v1720
    %v1722 = vrot.slane %v72, %v1721
    %v1723 = vmul.f32 %v1722, %v1693
    %v1724 = vmul.f32 %v1722, %v1694
    %v1725 = vadd.f32 %v1711, 1e-06
    %v1726 = vadd.f32 %v1718, 1e-06
    %v1727 = vrcp.pop %v1725
    %v1728 = vmul.f32 %v1723, %v1727
    %v1729 = vrcp.pop %v1726
    %v1730 = vmul.f32 %v1724, %v1729
    %v1731 = vlaneseq
    %v1732 = vshrl.u32 %v1731, 7
    %v1733 = vsub.s32 7, %v1732
    %v1734 = vrot.slane %v72, %v1733
    %v1735 = vadd.f32 %v1728, %v1734
    %v1736 = vadd.f32 %v1730, %v1734
    %v1737 = vlaneseq
    %v1738 = vshrl.u32 %v1737, 7
    %v1739 = vsub.s32 1, %v1738
    %v1740 = vrot.slane %v72, %v1739
    %1745 = vrot.lane.b32.xlu0 %v60, 96
    %v1746 = vpop.permute.xlu0 %1745
    %1747 = vrot.lane.b32.xlu0 %v61, 96
    %v1748 = vpop.permute.xlu0 %1747
    %1749 = vrot.lane.b32.xlu0 %v62, 96
    %v1750 = vpop.permute.xlu0 %1749
    %1751 = vrot.lane.b32.xlu0 %v63, 96
    %v1752 = vpop.permute.xlu0 %1751
    %v1758 = vsel %vm75, %v1735, 0
    %v1761 = vsel %vm75, %v1736, 0
    %1763 = vmatprep.subr.mxu0 0.0
    %1764 = vmatpush1.msra.mxu0 %v1746
    %1765 = vmatprep.subr.mxu0 0.0
    %1766 = vmatpush1.msra.mxu0 %v1748
    %1767 = vmatprep.subr.mxu0 0.0
    %1768 = vmatpush1.msra.mxu0 %v1750
    %1769 = vmatprep.subr.mxu0 0.0
    %1770 = vmatpush1.msra.mxu0 %v1752
    %1771 = vmatprep.subr.mxu0 0.0
    %1772 = vmatpush1.msra.mxu0 0.0
    %1773 = vmatprep.subr.mxu0 0.0
    %1774 = vmatpush1.msra.mxu0 0.0
    %1775 = vmatprep.subr.mxu0 0.0
    %1776 = vmatpush1.msra.mxu0 0.0
    %1777 = vmatprep.subr.mxu0 0.0
    %1778 = vmatpush1.msra.mxu0 0.0
    %1779 = vmatprep.subr.mxu0 0.0
    %1780 = vmatpush1.msra.mxu0 0.0
    %1781 = vmatprep.subr.mxu0 0.0
    %1782 = vmatpush1.msra.mxu0 0.0
    %1783 = vmatprep.subr.mxu0 0.0
    %1784 = vmatpush1.msra.mxu0 0.0
    %1785 = vmatprep.subr.mxu0 0.0
    %1786 = vmatpush1.msra.mxu0 0.0
    %1787 = vmatprep.subr.mxu0 0.0
    %1788 = vmatpush1.msra.mxu0 0.0
    %1789 = vmatprep.subr.mxu0 0.0
    %1790 = vmatpush1.msra.mxu0 0.0
    %1791 = vmatprep.subr.mxu0 0.0
    %1792 = vmatpush1.msra.mxu0 0.0
    %1793 = vmatprep.subr.mxu0 0.0
    %1794 = vmatpush1.msra.mxu0 0.0
    %1795 = vmatprep.subr.mxu0 0.0
    %1796 = vmatpush1.msra.mxu0 0.0
    %1797 = vmatprep.subr.mxu0 0.0
    %1798 = vmatpush1.msra.mxu0 0.0
    %1799 = vmatprep.subr.mxu0 0.0
    %1800 = vmatpush1.msra.mxu0 0.0
    %1801 = vmatprep.subr.mxu0 0.0
    %1802 = vmatpush1.msra.mxu0 0.0
    %1803 = vmatprep.subr.mxu0 0.0
    %1804 = vmatpush1.msra.mxu0 0.0
    %1805 = vmatprep.subr.mxu0 0.0
    %1806 = vmatpush1.msra.mxu0 0.0
    %1807 = vmatprep.subr.mxu0 0.0
    %1808 = vmatpush1.msra.mxu0 0.0
    %1809 = vmatprep.subr.mxu0 0.0
    %1810 = vmatpush1.msra.mxu0 0.0
    %1811 = vmatprep.subr.mxu0 0.0
    %1812 = vmatpush1.msra.mxu0 0.0
    %1813 = vmatprep.subr.mxu0 0.0
    %1814 = vmatpush1.msra.mxu0 0.0
    %1815 = vmatprep.subr.mxu0 0.0
    %1816 = vmatpush1.msra.mxu0 0.0
    %1817 = vmatprep.subr.mxu0 0.0
    %1818 = vmatpush1.msra.mxu0 0.0
    %1819 = vmatprep.subr.mxu0 0.0
    %1820 = vmatpush1.msra.mxu0 0.0
    %1821 = vmatprep.subr.mxu0 0.0
    %1822 = vmatpush1.msra.mxu0 0.0
    %1823 = vmatprep.subr.mxu0 0.0
    %1824 = vmatpush1.msra.mxu0 0.0
    %1825 = vmatprep.subr.mxu0 0.0
    %1826 = vmatpush1.msra.mxu0 0.0
    %1827 = vmatprep.mubr.f32.mxu0 0.0
    %1828 = vmatmul.mubr.f32.gmra.mrb[0].mxu0 %v1758
    %v1829 = vpop.f32.mrb[0].mxu0
    %v1830 = vadd.f32 %v1740, %v1829
    %v1831 = vpop.f32.mrb[0].mxu0
    %1832 = vmatprep.mubr.f32.mxu0 0.0
    %1833 = vmatmul.mubr.f32.gmra.mrb[0].mxu0 %v1761
    %v1834 = vpop.f32.mrb[0].mxu0
    %v1835 = vadd.f32 %v1740, %v1834
    %v1836 = vpop.f32.mrb[0].mxu0
    %1837 = vdwg.mxu0
    %v1838 = vmax.f32 %v1830, 0.0
    %v1839 = vmax.f32 %v1835, 0.0
    %v1840 = vlaneseq
    %v1841 = vshrl.u32 %v1840, 7
    %v1842 = vsub.s32 3, %v1841
    %v1843 = vrot.slane %v72, %v1842
    %vm1844 = vcmask 523264
    %v1846 = vsel %vm1844, %v1838, 0
    %v1849 = vsel %vm1844, %v1839, 0
    %1851 = vmatprep.subr.mxu0 0.0
    %1852 = vmatpush1.msra.mxu0 %v64
    %1853 = vmatprep.subr.mxu0 0.0
    %1854 = vmatpush1.msra.mxu0 %v65
    %1855 = vmatprep.subr.mxu0 0.0
    %1856 = vmatpush1.msra.mxu0 %v66
    %1857 = vmatprep.subr.mxu0 0.0
    %1858 = vmatpush1.msra.mxu0 %v67
    %1859 = vmatprep.subr.mxu0 0.0
    %1860 = vmatpush1.msra.mxu0 %v68
    %1861 = vmatprep.subr.mxu0 0.0
    %1862 = vmatpush1.msra.mxu0 %v69
    %1863 = vmatprep.subr.mxu0 0.0
    %1864 = vmatpush1.msra.mxu0 %v70
    %1865 = vmatprep.subr.mxu0 0.0
    %1866 = vmatpush1.msra.mxu0 %v71
    %1867 = vmatprep.subr.mxu0 0.0
    %1868 = vmatpush1.msra.mxu0 0.0
    %1869 = vmatprep.subr.mxu0 0.0
    %1870 = vmatpush1.msra.mxu0 0.0
    %1871 = vmatprep.subr.mxu0 0.0
    %1872 = vmatpush1.msra.mxu0 0.0
    %1873 = vmatprep.subr.mxu0 0.0
    %1874 = vmatpush1.msra.mxu0 0.0
    %1875 = vmatprep.subr.mxu0 0.0
    %1876 = vmatpush1.msra.mxu0 0.0
    %1877 = vmatprep.subr.mxu0 0.0
    %1878 = vmatpush1.msra.mxu0 0.0
    %1879 = vmatprep.subr.mxu0 0.0
    %1880 = vmatpush1.msra.mxu0 0.0
    %1881 = vmatprep.subr.mxu0 0.0
    %1882 = vmatpush1.msra.mxu0 0.0
    %1883 = vmatprep.subr.mxu0 0.0
    %1884 = vmatpush1.msra.mxu0 0.0
    %1885 = vmatprep.subr.mxu0 0.0
    %1886 = vmatpush1.msra.mxu0 0.0
    %1887 = vmatprep.subr.mxu0 0.0
    %1888 = vmatpush1.msra.mxu0 0.0
    %1889 = vmatprep.subr.mxu0 0.0
    %1890 = vmatpush1.msra.mxu0 0.0
    %1891 = vmatprep.subr.mxu0 0.0
    %1892 = vmatpush1.msra.mxu0 0.0
    %1893 = vmatprep.subr.mxu0 0.0
    %1894 = vmatpush1.msra.mxu0 0.0
    %1895 = vmatprep.subr.mxu0 0.0
    %1896 = vmatpush1.msra.mxu0 0.0
    %1897 = vmatprep.subr.mxu0 0.0
    %1898 = vmatpush1.msra.mxu0 0.0
    %1899 = vmatprep.subr.mxu0 0.0
    %1900 = vmatpush1.msra.mxu0 0.0
    %1901 = vmatprep.subr.mxu0 0.0
    %1902 = vmatpush1.msra.mxu0 0.0
    %1903 = vmatprep.subr.mxu0 0.0
    %1904 = vmatpush1.msra.mxu0 0.0
    %1905 = vmatprep.subr.mxu0 0.0
    %1906 = vmatpush1.msra.mxu0 0.0
    %1907 = vmatprep.subr.mxu0 0.0
    %1908 = vmatpush1.msra.mxu0 0.0
    %1909 = vmatprep.subr.mxu0 0.0
    %1910 = vmatpush1.msra.mxu0 0.0
    %1911 = vmatprep.subr.mxu0 0.0
    %1912 = vmatpush1.msra.mxu0 0.0
    %1913 = vmatprep.subr.mxu0 0.0
    %1914 = vmatpush1.msra.mxu0 0.0
    %1915 = vmatprep.mubr.f32.mxu0 0.0
    %1916 = vmatmul.mubr.f32.gmra.mrb[0].mxu0 %v1846
    %v1917 = vpop.f32.mrb[0].mxu0
    %v1918 = vadd.f32 %v1843, %v1917
    %v1919 = vpop.f32.mrb[0].mxu0
    %1920 = vmatprep.mubr.f32.mxu0 0.0
    %1921 = vmatmul.mubr.f32.gmra.mrb[0].mxu0 %v1849
    %v1922 = vpop.f32.mrb[0].mxu0
    %v1923 = vadd.f32 %v1843, %v1922
    %v1924 = vpop.f32.mrb[0].mxu0
    %1925 = vdwg.mxu0
    %v1926 = vadd.f32 %v1683, %v1918
    %v1927 = vadd.f32 %v1684, %v1923
    %1928 = vst.msk [vmem:[#allocation8] sm:$0xff] %vm75, %v1926
    %1929 = vst.msk [vmem:[#allocation8 + $0x8] sm:$0xff] %vm75, %v1927
    // Predicated region
    $region26: #{tpu_custom_call.1} parent=1 // pred_check
      _
    $region27: #{tpu_custom_call.1} parent=1 // pred_check_branch
      %1931 = sbr.rel (0) target = $region29
    $region28: #{tpu_custom_call.1} parent=1 // pred_region
      %s1933 = ssub.s32 256, 256
      %1934 = vsyncadd [#allocation4], %s1933
      %s1935 = sshll.u32 [#allocation8], 4
      %s1936 = int_to_ptr.vmem [resolvable:$true] %s1935
      %1941 = dma.vmem_to_hbm [thread:$0]  %s1936, 256, %s3, [#allocation4], 128, 128, 8
    $region29: #{tpu_custom_call.1} parent=1 // pred_fallthru
      _
    // Predicated region
    $region30: #{tpu_custom_call.1} parent=1 // pred_check
      _
    $region31: #{tpu_custom_call.1} parent=1 // pred_check_branch
      %1943 = sbr.rel (0) target = $region33
    $region32: #{tpu_custom_call.1} parent=1 // pred_region
      %1944 = dma.done [#allocation4], 256
    $region33: #{tpu_custom_call.1} parent=1 // pred_fallthru
      _
    %1945 = vsyncpa [#allocation3], 1
    %1946 = vsyncpa [#allocation6], 1
    %1947 = vsyncpa [#allocation4], 1

</llo_original>
